<compile_context>
chip_gen: v6e
topology: v6e:2x2x1
jax: 0.10.0
libtpu: 0.0.40
codegen_flags: <defaults>
</compile_context>

<pallas_src>
import jax
import jax.numpy as jnp
from jax import lax
from jax.experimental import pallas as pl
from jax.experimental.pallas import tpu as pltpu


def _dwconv_kernel(x_ref, w_ref, b_ref, o_ref, xpad_ref):
    # x_ref:    VMEM (1, H, W, Cb)          input slab (original dtype)
    # w_ref:    VMEM (9, Cb) f32            depthwise 3x3 taps, tap-major
    # b_ref:    VMEM (1, Cb) f32            bias
    # o_ref:    VMEM (1, H, W, Cb)          output slab
    # xpad_ref: VMEM (H+2, W+16, Cb) x.dt   scratch: halo plane.
    #   Layout: logical padded column j lives at physical column j + 7, so the
    #   interior starts at column 8 (an 8-sublane tile boundary -> the big
    #   interior store is unmasked) and the zero halo columns are 7 and W+8.
    H = o_ref.shape[1]
    W = o_ref.shape[2]
    Cb = o_ref.shape[3]
    Wp = xpad_ref.shape[1]          # W + 16
    dt = xpad_ref.dtype

    # Zero only the halo ring (not the whole plane): two full rows plus two
    # aligned 8-wide column blocks.  The ring is never overwritten by the
    # interior copy, but the scratch is per-core and persists across grid
    # steps, so it is (cheaply) re-zeroed every step — no program_id guard.
    zrow = jnp.zeros((1, Wp, Cb), dt)
    xpad_ref[0:1, :, :] = zrow
    xpad_ref[H + 1:H + 2, :, :] = zrow
    zcol = jnp.zeros((H, 8, Cb), dt)
    xpad_ref[1:H + 1, 0:8, :] = zcol
    xpad_ref[1:H + 1, Wp - 8:Wp, :] = zcol

    # Interior copy: H slices are along the untiled outer dim, W offset 8 is
    # tile aligned -> dense unmasked store.  Stays in the input dtype (bf16
    # halo stays bf16 on v6e/v7x; f32 inputs are unchanged).
    xpad_ref[1:H + 1, 8:8 + W, :] = x_ref[0]

    # 9 shifted taps.  Channels stay on the 128-lane axis; kh shifts are along
    # the outer dim, kw shifts along sublanes (offsets 7/8/9).  The inner loop
    # is pure f32 multiply-accumulate: no per-tap masks / selects — boundary
    # zeros live in the (cheap) halo, not on the VALU critical path.
    acc = jnp.zeros((H, W, Cb), jnp.float32)
    for kh in range(3):
        for kw in range(3):
            tap = xpad_ref[kh:kh + H, 7 + kw:7 + kw + W, :]
            acc = acc + tap.astype(jnp.float32) * w_ref[kh * 3 + kw, :]

    o_ref[0] = (acc + b_ref[0, :]).astype(o_ref.dtype)


def dwconv_pallas_nhwc(x, weight, bias, *, cb=None):
    """Depthwise 3x3, stride 1, pad 1, groups=C, with bias. Channels-last.

    x:      (N, H, W, C)
    weight: (C, 1, 3, 3)   (PyTorch depthwise Conv2d weight layout)
    bias:   (C,)
    """
    N, H, W, C = x.shape
    assert weight.shape == (C, 1, 3, 3) and bias.shape == (C,)

    # (C, 1, 3, 3) -> (9, C): row t holds tap (kh, kw) = (t // 3, t % 3) for
    # every channel, so the kernel does one lane-dense vector load per tap.
    w9c = weight.reshape(C, 9).T.astype(jnp.float32)      # (9, C)
    b1c = bias.reshape(1, C).astype(jnp.float32)           # (1, C)

    ebytes = jnp.dtype(x.dtype).itemsize

    def step_bytes(c):
        blk = H * W * c * ebytes
        scr = (H + 2) * (W + 16) * c * ebytes
        return 4 * blk + scr   # double-buffered input + output blocks + scratch

    if cb is None:
        # Keep the per-step working set comfortably inside every generation's
        # scoped-VMEM budget (we raise the limit to 32 MiB below).
        budget = 12 * 1024 * 1024
        cands = []
        for c in (C, 512, 384, 256, 128):
            if 0 < c <= C and C % c == 0 and c not in cands:
                cands.append(c)
        cands.sort(reverse=True)
        cb = cands[-1]
        for c in cands:
            if step_bytes(c) <= budget:
                cb = c
                break
        # v7x has two TensorCores; keep at least two parallel grid steps.
        if N * (C // cb) < 2:
            for c in (cb // 2, 128):
                if c > 0 and C % c == 0 and C // c >= 2:
                    cb = c
                    break
    assert C % cb == 0, "channel block must divide C"
    n_cblk = C // cb

    grid_spec = pltpu.PrefetchScalarGridSpec(
        num_scalar_prefetch=0,
        grid=(N, n_cblk),
        in_specs=[
            pl.BlockSpec((1, H, W, cb), lambda n, c: (n, 0, 0, c)),
            pl.BlockSpec((9, cb), lambda n, c: (0, c)),
            pl.BlockSpec((1, cb), lambda n, c: (0, c)),
        ],
        out_specs=pl.BlockSpec((1, H, W, cb), lambda n, c: (n, 0, 0, c)),
        scratch_shapes=[pltpu.VMEM((H + 2, W + 16, cb), x.dtype)],
    )

    return pl.pallas_call(
        _dwconv_kernel,
        out_shape=jax.ShapeDtypeStruct((N, H, W, C), x.dtype),
        grid_spec=grid_spec,
        compiler_params=pltpu.CompilerParams(
            dimension_semantics=("parallel", "parallel"),
            vmem_limit_bytes=32 * 1024 * 1024),
    )(x, w9c, b1c)


def dwconv_pallas(x, weight, bias):
    """NCHW adapter for drop-in parity with the PyTorch module.

    Each transpose adds a full HBM read + write; in a real model keep
    activations NHWC end-to-end and call `dwconv_pallas_nhwc` directly.
    """
    x_nhwc = jnp.transpose(x, (0, 2, 3, 1))
    y_nhwc = dwconv_pallas_nhwc(x_nhwc, weight, bias)
    return jnp.transpose(y_nhwc, (0, 3, 1, 2))


def dwconv_reference(x, weight, bias):
    # jax reference: grouped conv, groups = C (depthwise), pad 1, stride 1.
    out = lax.conv_general_dilated(
        x, weight,
        window_strides=(1, 1),
        padding=((1, 1), (1, 1)),
        dimension_numbers=("NCHW", "OIHW", "NCHW"),
        feature_group_count=x.shape[1],
        precision=lax.Precision.HIGHEST,
    )
    return out + bias[None, :, None, None]


if __name__ == "__main__":
    key = jax.random.PRNGKey(0)
    k_x, k_w, k_b = jax.random.split(key, 3)

    # Small shapes consistent with the module (dim default is 768; use 128 so
    # the lane-dense channel layout is actually exercised).
    N, C, H, W = 2, 128, 16, 16
    x = jax.random.normal(k_x, (N, C, H, W), dtype=jnp.float32)
    # nn.Conv2d(dim, dim, 3, 1, 1, groups=dim) -> weight (dim, 1, 3, 3), bias (dim,)
    weight = jax.random.normal(k_w, (C, 1, 3, 3), dtype=jnp.float32) * 0.1
    bias = jax.random.normal(k_b, (C,), dtype=jnp.float32) * 0.1

    ref = dwconv_reference(x, weight, bias)

    # Preferred path: channels-last activations, no layout round trip.
    x_nhwc = jnp.transpose(x, (0, 2, 3, 1))
    out_nhwc = jax.block_until_ready(dwconv_pallas_nhwc(x_nhwc, weight, bias))
    assert out_nhwc.shape == (N, H, W, C)
    assert jnp.allclose(jnp.transpose(out_nhwc, (0, 3, 1, 2)), ref,
                        atol=1e-5, rtol=1e-5), "NHWC mismatch vs reference"

    # NCHW adapter (PyTorch-layout parity, matches DWConv.forward).
    out = jax.block_until_ready(dwconv_pallas(x, weight, bias))
    assert out.shape == (N, C, H, W)
    assert jnp.allclose(out, ref, atol=1e-5, rtol=1e-5), "NCHW mismatch vs reference"

    print("KERNEL_OK")
</pallas_src>

<mosaic_0001>
module attributes {stable_mosaic.version = 11 : i64} {
  func.func @_dwconv_kernel(%arg0: i32, %arg1: i32, %arg2: memref<1x16x16x128xf32, #tpu.memory_space<vmem>>, %arg3: memref<9x128xf32, #tpu.memory_space<vmem>>, %arg4: memref<1x128xf32, #tpu.memory_space<vmem>>, %arg5: memref<1x16x16x128xf32, #tpu.memory_space<vmem>>, %arg6: memref<18x32x128xf32, #tpu.memory_space<vmem>>) attributes {dimension_semantics = [#tpu.dimension_semantics<parallel>, #tpu.dimension_semantics<parallel>], iteration_bounds = array<i64: 2, 1>, scalar_prefetch = 0 : i64, scratch_operands = 1 : i64, tpu.core_type = #tpu.core_type<tc>, window_params = [{transform_indices = @transform_0, window_bounds = array<i64: 1, 16, 16, 128>}, {transform_indices = @transform_1, window_bounds = array<i64: 9, 128>}, {transform_indices = @transform_2, window_bounds = array<i64: 1, 128>}, {transform_indices = @transform_3, window_bounds = array<i64: 1, 16, 16, 128>}]} {
    %cst = arith.constant 0.000000e+00 : f32
    %0 = vector.broadcast %cst : f32 to vector<1x32x128xf32>
    %c0 = arith.constant 0 : index
    %c0_0 = arith.constant 0 : index
    %c0_1 = arith.constant 0 : index
    %1 = vector.load %arg6[%c0, %c0_0, %c0_1] : memref<18x32x128xf32, #tpu.memory_space<vmem>>, vector<1x32x128xf32>
    tpu.vector_store %arg6[%c0, %c0_0, %c0_1], %0 {strides = array<i32>} : memref<18x32x128xf32, #tpu.memory_space<vmem>>, vector<1x32x128xf32>,
    %c17 = arith.constant 17 : index
    %c0_2 = arith.constant 0 : index
    %c0_3 = arith.constant 0 : index
    %2 = vector.load %arg6[%c17, %c0_2, %c0_3] : memref<18x32x128xf32, #tpu.memory_space<vmem>>, vector<1x32x128xf32>
    tpu.vector_store %arg6[%c17, %c0_2, %c0_3], %0 {strides = array<i32>} : memref<18x32x128xf32, #tpu.memory_space<vmem>>, vector<1x32x128xf32>,
    %cst_4 = arith.constant 0.000000e+00 : f32
    %3 = vector.broadcast %cst_4 : f32 to vector<16x8x128xf32>
    %c1 = arith.constant 1 : index
    %c0_5 = arith.constant 0 : index
    %c0_6 = arith.constant 0 : index
    %4 = vector.load %arg6[%c1, %c0_5, %c0_6] : memref<18x32x128xf32, #tpu.memory_space<vmem>>, vector<16x8x128xf32>
    tpu.vector_store %arg6[%c1, %c0_5, %c0_6], %3 {strides = array<i32>} : memref<18x32x128xf32, #tpu.memory_space<vmem>>, vector<16x8x128xf32>,
    %c1_7 = arith.constant 1 : index
    %c24 = arith.constant 24 : index
    %c0_8 = arith.constant 0 : index
    %5 = vector.load %arg6[%c1_7, %c24, %c0_8] : memref<18x32x128xf32, #tpu.memory_space<vmem>>, vector<16x8x128xf32>
    tpu.vector_store %arg6[%c1_7, %c24, %c0_8], %3 {strides = array<i32>} : memref<18x32x128xf32, #tpu.memory_space<vmem>>, vector<16x8x128xf32>,
    %c0_9 = arith.constant 0 : index
    %c0_10 = arith.constant 0 : index
    %c0_11 = arith.constant 0 : index
    %c0_12 = arith.constant 0 : index
    %6 = vector.load %arg2[%c0_9, %c0_10, %c0_11, %c0_12] : memref<1x16x16x128xf32, #tpu.memory_space<vmem>>, vector<1x16x16x128xf32>
    %7 = vector.shape_cast %6 : vector<1x16x16x128xf32> to vector<16x16x128xf32>
    %c1_13 = arith.constant 1 : index
    %c8 = arith.constant 8 : index
    %c0_14 = arith.constant 0 : index
    %8 = vector.load %arg6[%c1_13, %c8, %c0_14] : memref<18x32x128xf32, #tpu.memory_space<vmem>>, vector<16x16x128xf32>
    tpu.vector_store %arg6[%c1_13, %c8, %c0_14], %7 {strides = array<i32>} : memref<18x32x128xf32, #tpu.memory_space<vmem>>, vector<16x16x128xf32>,
    %cst_15 = arith.constant 0.000000e+00 : f32
    %9 = vector.broadcast %cst_15 : f32 to vector<16x16x128xf32>
    %c0_16 = arith.constant 0 : index
    %c7 = arith.constant 7 : index
    %c0_17 = arith.constant 0 : index
    %10 = vector.load %arg6[%c0_16, %c7, %c0_17] : memref<18x32x128xf32, #tpu.memory_space<vmem>>, vector<16x16x128xf32>
    %c0_18 = arith.constant 0 : index
    %c0_19 = arith.constant 0 : index
    %11 = vector.load %arg3[%c0_18, %c0_19] : memref<9x128xf32, #tpu.memory_space<vmem>>, vector<1x128xf32>
    %12 = vector.shape_cast %11 : vector<1x128xf32> to vector<128xf32>
    %13 = vector.shape_cast %12 : vector<128xf32> to vector<1x1x128xf32>
    %14 = vector.broadcast %13 : vector<1x1x128xf32> to vector<16x16x128xf32>
    %15 = arith.mulf %10, %14 : vector<16x16x128xf32>
    %16 = arith.addf %9, %15 : vector<16x16x128xf32>
    %c0_20 = arith.constant 0 : index
    %c8_21 = arith.constant 8 : index
    %c0_22 = arith.constant 0 : index
    %17 = vector.load %arg6[%c0_20, %c8_21, %c0_22] : memref<18x32x128xf32, #tpu.memory_space<vmem>>, vector<16x16x128xf32>
    %c1_23 = arith.constant 1 : index
    %c0_24 = arith.constant 0 : index
    %18 = vector.load %arg3[%c1_23, %c0_24] : memref<9x128xf32, #tpu.memory_space<vmem>>, vector<1x128xf32>
    %19 = vector.shape_cast %18 : vector<1x128xf32> to vector<128xf32>
    %20 = vector.shape_cast %19 : vector<128xf32> to vector<1x1x128xf32>
    %21 = vector.broadcast %20 : vector<1x1x128xf32> to vector<16x16x128xf32>
    %22 = arith.mulf %17, %21 : vector<16x16x128xf32>
    %23 = arith.addf %16, %22 : vector<16x16x128xf32>
    %c0_25 = arith.constant 0 : index
    %c9 = arith.constant 9 : index
    %c0_26 = arith.constant 0 : index
    %24 = vector.load %arg6[%c0_25, %c9, %c0_26] : memref<18x32x128xf32, #tpu.memory_space<vmem>>, vector<16x16x128xf32>
    %c2 = arith.constant 2 : index
    %c0_27 = arith.constant 0 : index
    %25 = vector.load %arg3[%c2, %c0_27] : memref<9x128xf32, #tpu.memory_space<vmem>>, vector<1x128xf32>
    %26 = vector.shape_cast %25 : vector<1x128xf32> to vector<128xf32>
    %27 = vector.shape_cast %26 : vector<128xf32> to vector<1x1x128xf32>
    %28 = vector.broadcast %27 : vector<1x1x128xf32> to vector<16x16x128xf32>
    %29 = arith.mulf %24, %28 : vector<16x16x128xf32>
    %30 = arith.addf %23, %29 : vector<16x16x128xf32>
    %c1_28 = arith.constant 1 : index
    %c7_29 = arith.constant 7 : index
    %c0_30 = arith.constant 0 : index
    %31 = vector.load %arg6[%c1_28, %c7_29, %c0_30] : memref<18x32x128xf32, #tpu.memory_space<vmem>>, vector<16x16x128xf32>
    %c3 = arith.constant 3 : index
    %c0_31 = arith.constant 0 : index
    %32 = vector.load %arg3[%c3, %c0_31] : memref<9x128xf32, #tpu.memory_space<vmem>>, vector<1x128xf32>
    %33 = vector.shape_cast %32 : vector<1x128xf32> to vector<128xf32>
    %34 = vector.shape_cast %33 : vector<128xf32> to vector<1x1x128xf32>
    %35 = vector.broadcast %34 : vector<1x1x128xf32> to vector<16x16x128xf32>
    %36 = arith.mulf %31, %35 : vector<16x16x128xf32>
    %37 = arith.addf %30, %36 : vector<16x16x128xf32>
    %c1_32 = arith.constant 1 : index
    %c8_33 = arith.constant 8 : index
    %c0_34 = arith.constant 0 : index
    %38 = vector.load %arg6[%c1_32, %c8_33, %c0_34] : memref<18x32x128xf32, #tpu.memory_space<vmem>>, vector<16x16x128xf32>
    %c4 = arith.constant 4 : index
    %c0_35 = arith.constant 0 : index
    %39 = vector.load %arg3[%c4, %c0_35] : memref<9x128xf32, #tpu.memory_space<vmem>>, vector<1x128xf32>
    %40 = vector.shape_cast %39 : vector<1x128xf32> to vector<128xf32>
    %41 = vector.shape_cast %40 : vector<128xf32> to vector<1x1x128xf32>
    %42 = vector.broadcast %41 : vector<1x1x128xf32> to vector<16x16x128xf32>
    %43 = arith.mulf %38, %42 : vector<16x16x128xf32>
    %44 = arith.addf %37, %43 : vector<16x16x128xf32>
    %c1_36 = arith.constant 1 : index
    %c9_37 = arith.constant 9 : index
    %c0_38 = arith.constant 0 : index
    %45 = vector.load %arg6[%c1_36, %c9_37, %c0_38] : memref<18x32x128xf32, #tpu.memory_space<vmem>>, vector<16x16x128xf32>
    %c5 = arith.constant 5 : index
    %c0_39 = arith.constant 0 : index
    %46 = vector.load %arg3[%c5, %c0_39] : memref<9x128xf32, #tpu.memory_space<vmem>>, vector<1x128xf32>
    %47 = vector.shape_cast %46 : vector<1x128xf32> to vector<128xf32>
    %48 = vector.shape_cast %47 : vector<128xf32> to vector<1x1x128xf32>
    %49 = vector.broadcast %48 : vector<1x1x128xf32> to vector<16x16x128xf32>
    %50 = arith.mulf %45, %49 : vector<16x16x128xf32>
    %51 = arith.addf %44, %50 : vector<16x16x128xf32>
    %c2_40 = arith.constant 2 : index
    %c7_41 = arith.constant 7 : index
    %c0_42 = arith.constant 0 : index
    %52 = vector.load %arg6[%c2_40, %c7_41, %c0_42] : memref<18x32x128xf32, #tpu.memory_space<vmem>>, vector<16x16x128xf32>
    %c6 = arith.constant 6 : index
    %c0_43 = arith.constant 0 : index
    %53 = vector.load %arg3[%c6, %c0_43] : memref<9x128xf32, #tpu.memory_space<vmem>>, vector<1x128xf32>
    %54 = vector.shape_cast %53 : vector<1x128xf32> to vector<128xf32>
    %55 = vector.shape_cast %54 : vector<128xf32> to vector<1x1x128xf32>
    %56 = vector.broadcast %55 : vector<1x1x128xf32> to vector<16x16x128xf32>
    %57 = arith.mulf %52, %56 : vector<16x16x128xf32>
    %58 = arith.addf %51, %57 : vector<16x16x128xf32>
    %c2_44 = arith.constant 2 : index
    %c8_45 = arith.constant 8 : index
    %c0_46 = arith.constant 0 : index
    %59 = vector.load %arg6[%c2_44, %c8_45, %c0_46] : memref<18x32x128xf32, #tpu.memory_space<vmem>>, vector<16x16x128xf32>
    %c7_47 = arith.constant 7 : index
    %c0_48 = arith.constant 0 : index
    %60 = vector.load %arg3[%c7_47, %c0_48] : memref<9x128xf32, #tpu.memory_space<vmem>>, vector<1x128xf32>
    %61 = vector.shape_cast %60 : vector<1x128xf32> to vector<128xf32>
    %62 = vector.shape_cast %61 : vector<128xf32> to vector<1x1x128xf32>
    %63 = vector.broadcast %62 : vector<1x1x128xf32> to vector<16x16x128xf32>
    %64 = arith.mulf %59, %63 : vector<16x16x128xf32>
    %65 = arith.addf %58, %64 : vector<16x16x128xf32>
    %c2_49 = arith.constant 2 : index
    %c9_50 = arith.constant 9 : index
    %c0_51 = arith.constant 0 : index
    %66 = vector.load %arg6[%c2_49, %c9_50, %c0_51] : memref<18x32x128xf32, #tpu.memory_space<vmem>>, vector<16x16x128xf32>
    %c8_52 = arith.constant 8 : index
    %c0_53 = arith.constant 0 : index
    %67 = vector.load %arg3[%c8_52, %c0_53] : memref<9x128xf32, #tpu.memory_space<vmem>>, vector<1x128xf32>
    %68 = vector.shape_cast %67 : vector<1x128xf32> to vector<128xf32>
    %69 = vector.shape_cast %68 : vector<128xf32> to vector<1x1x128xf32>
    %70 = vector.broadcast %69 : vector<1x1x128xf32> to vector<16x16x128xf32>
    %71 = arith.mulf %66, %70 : vector<16x16x128xf32>
    %72 = arith.addf %65, %71 : vector<16x16x128xf32>
    %c0_54 = arith.constant 0 : index
    %c0_55 = arith.constant 0 : index
    %73 = vector.load %arg4[%c0_54, %c0_55] : memref<1x128xf32, #tpu.memory_space<vmem>>, vector<1x128xf32>
    %74 = vector.shape_cast %73 : vector<1x128xf32> to vector<128xf32>
    %75 = vector.shape_cast %74 : vector<128xf32> to vector<1x1x128xf32>
    %76 = vector.broadcast %75 : vector<1x1x128xf32> to vector<16x16x128xf32>
    %77 = arith.addf %72, %76 : vector<16x16x128xf32>
    %c0_56 = arith.constant 0 : index
    %c0_57 = arith.constant 0 : index
    %c0_58 = arith.constant 0 : index
    %c0_59 = arith.constant 0 : index
    %78 = vector.load %arg5[%c0_56, %c0_57, %c0_58, %c0_59] : memref<1x16x16x128xf32, #tpu.memory_space<vmem>>, vector<1x16x16x128xf32>
    %79 = vector.shape_cast %78 : vector<1x16x16x128xf32> to vector<16x16x128xf32>
    %80 = vector.shape_cast %77 : vector<16x16x128xf32> to vector<1x16x16x128xf32>
    tpu.vector_store %arg5[%c0_56, %c0_57, %c0_58, %c0_59], %80 {strides = array<i32>} : memref<1x16x16x128xf32, #tpu.memory_space<vmem>>, vector<1x16x16x128xf32>,
    return
  }
  func.func @transform_0(%arg0: i32, %arg1: i32) -> (i32, i32, i32, i32) {
    %c0_i32 = arith.constant 0 : i32
    %c0_i32_0 = arith.constant 0 : i32
    %c0_i32_1 = arith.constant 0 : i32
    return %arg0, %c0_i32, %c0_i32_0, %arg1 : i32, i32, i32, i32
  }
  func.func @transform_1(%arg0: i32, %arg1: i32) -> (i32, i32) {
    %c0_i32 = arith.constant 0 : i32
    %c0_i32_0 = arith.constant 0 : i32
    return %c0_i32, %arg1 : i32, i32
  }
  func.func @transform_2(%arg0: i32, %arg1: i32) -> (i32, i32) {
    %c0_i32 = arith.constant 0 : i32
    %c0_i32_0 = arith.constant 0 : i32
    return %c0_i32, %arg1 : i32, i32
  }
  func.func @transform_3(%arg0: i32, %arg1: i32) -> (i32, i32, i32, i32) {
    %c0_i32 = arith.constant 0 : i32
    %c0_i32_0 = arith.constant 0 : i32
    %c0_i32_1 = arith.constant 0 : i32
    return %arg0, %c0_i32, %c0_i32_0, %arg1 : i32, i32, i32, i32
  }
}

</mosaic_0001>

<llo_original>
// kernel: tpu_custom_call.1
$region0: #{tpu_custom_call.1}
  #allocation0 [shape = 'u32[]', space=smem, size = 0x4, offset = 0x4, fixed_abs, tag = 'smem constant byte address 0x4 - core index']
  #allocation1 [shape = 'u32[144,128]{1,0:T(1,128)}', space=vmem, size = 0x12000, scoped, tag = 'internal scratch']
  #allocation2 [shape = 'f32[18,32,128]{2,1,0:T(8,128)}', space=vmem, size = 0x48000, scoped, tag = 'scratch operand']
  %s0 = inlined_call_operand.hbm [shape: f32[2,16,16,128], index: 0, kind: input, shape index: {}]
  %s1 = inlined_call_operand.hbm [shape: f32[9,128], index: 1, kind: input, shape index: {}]
  %s2 = inlined_call_operand.vmem [shape: f32[1,128], index: 2, kind: input, shape index: {}]
  %s3 = inlined_call_operand.hbm [shape: f32[2,16,16,128], index: 3, kind: output, shape index: {}]
  %s4 = sld [smem:[#allocation0]]
  $region53: #{tpu_custom_call.1} parent=0
    _
  %s6 = ssub.s32 1, %s4
  %s7 = scalar_select 0, %s6, %s4
  $region1: #{tpu_custom_call.1} parent=0
    #allocation3 [shape = 'u8[262144]{0}', space=vmem, size = 0x40000, scoped, tag = 'input window, operand 0']
    #allocation4 [shape = 's32[2]{0}', space=sflag, size = 0x8, scoped, tag = 'scoped memory for tpu_custom_call.1']
    #allocation5 [shape = 's32[2]{0}', space=sflag, size = 0x8, scoped, tag = 'scoped memory for tpu_custom_call.1']
    #allocation6 [shape = 'u8[8192]{0}', space=vmem, size = 0x2000, scoped, tag = 'input window, operand 1, single buffered']
    #allocation7 [shape = 's32[1]{0}', space=sflag, size = 0x4, scoped, tag = 'scoped memory for tpu_custom_call.1']
    #allocation8 [shape = 'u8[262144]{0}', space=vmem, size = 0x40000, scoped, tag = 'output window, operand 0']
    %8 = vsyncpa [#allocation4], 0
    %s9 = scalar_lea.sflag [#allocation4], 1
    %10 = vsyncpa %s9, 0
    %11 = vsyncpa [#allocation7], 0
    %12 = vsyncpa [#allocation5], 0
    %s13 = scalar_lea.sflag [#allocation5], 1
    %14 = vsyncpa %s13, 0
    loop: start=0, step=1, limit=4
    $region2: #{tpu_custom_call.1} parent=1 // loop_pre_header
      _
    $region3: #{tpu_custom_call.1} parent=1 // loop_header
      %s16 = sphi 0, %s20
      %p17 = scmp.ge.s32.totalorder %s16, 4
      %s23 = sphi 0, %s35
      %s24 = sphi 0, %s31
      %s25 = sphi 0, %s23
      %s26 = sphi 0, %s24
      %s27 = sphi 0, %s25
      %s28 = sphi 0, %s26
      %s40 = sphi 0, %s42
      %s43 = sphi 0, %s40
      %s44 = sphi 0, %s43
      %s60 = sphi 0, %s44
      %s66 = sphi 0, %s68
      %s69 = sphi 0, %s66
      %s70 = sphi 0, %s69
      %s86 = sphi 0, %s70
      %s92 = sphi 0, %s94
      %s95 = sphi 0, %s92
      %s96 = sphi 0, %s95
      %s112 = sphi 0, %s96
      %s120 = sphi 0, %s122
      %s123 = sphi 0, %s120
      %s124 = sphi 0, %s123
      %s140 = sphi 0, %s124
    $region4: #{tpu_custom_call.1} parent=1 // loop_header_branch
      %19 = sbr.rel (%p17) target = $region8
    $region5: #{tpu_custom_call.1} parent=1 // loop_body
      %s21 = ssub.s32 %s16, 1
      %s22 = ssub.s32 %s16, 2
      %s29 = sadd.s32 1, %s24
      %p30 = scmp.ge.s32.totalorder %s29, 1
      %s31 = scalar_select %p30, 0, %s29
      %s32 = sadd.s32 1, %s23
      %s33 = scalar_select %p30, %s32, %s23
      %p34 = scmp.ge.s32.totalorder %s33, 2
      %s35 = scalar_select %p34, 0, %s33
      %s36 = ssub.s32 %s23, %s35
      %s37 = ssub.s32 %s24, %s31
      %s38 = sor.u32 %s36, %s37
      %p39 = scmp.eq.s32.totalorder %s38, 0
      %s41 = sadd.s32 %s40, 1
      %s42 = scalar_select %p39, %s40, %s41
      %p45 = pneg %p39
      %p46 = scmp.eq.s32.totalorder %s16, 1
      %p47 = por %p45, %p46
      %p48 = scmp.ne.s32.totalorder %s40, %s43
      %p49 = scmp.eq.s32.totalorder %s16, 0
      %p50 = por %p48, %p49
      %p51 = scmp.ne.s32.totalorder %s40, %s43
      %p52 = scmp.eq.s32.totalorder %s21, 1
      %p53 = por %p51, %p52
      %p54 = scmp.ne.s32.totalorder %s43, %s44
      %p55 = scmp.eq.s32.totalorder %s21, 0
      %p56 = por %p54, %p55
      %p57 = scmp.ne.s32.totalorder %s43, %s44
      %p58 = scmp.eq.s32.totalorder %s22, 1
      %p59 = por %p57, %p58
      %p61 = scmp.ne.s32.totalorder %s44, %s60
      %p62 = scmp.eq.s32.totalorder %s22, 0
      %p63 = por %p61, %p62
      %s64 = ssub.s32 %s24, %s31
      %p65 = scmp.eq.s32.totalorder %s64, 0
      %s67 = sadd.s32 %s66, 1
      %s68 = scalar_select %p65, %s66, %s67
      %p71 = pneg %p65
      %p72 = scmp.eq.s32.totalorder %s16, 1
      %p73 = por %p71, %p72
      %p74 = scmp.ne.s32.totalorder %s66, %s69
      %p75 = scmp.eq.s32.totalorder %s16, 0
      %p76 = por %p74, %p75
      %p77 = scmp.ne.s32.totalorder %s66, %s69
      %p78 = scmp.eq.s32.totalorder %s21, 1
      %p79 = por %p77, %p78
      %p80 = scmp.ne.s32.totalorder %s69, %s70
      %p81 = scmp.eq.s32.totalorder %s21, 0
      %p82 = por %p80, %p81
      %p83 = scmp.ne.s32.totalorder %s69, %s70
      %p84 = scmp.eq.s32.totalorder %s22, 1
      %p85 = por %p83, %p84
      %p87 = scmp.ne.s32.totalorder %s70, %s86
      %p88 = scmp.eq.s32.totalorder %s22, 0
      %p89 = por %p87, %p88
      %s90 = ssub.s32 %s24, %s31
      %p91 = scmp.eq.s32.totalorder %s90, 0
      %s93 = sadd.s32 %s92, 1
      %s94 = scalar_select %p91, %s92, %s93
      %p97 = pneg %p91
      %p98 = scmp.eq.s32.totalorder %s16, 1
      %p99 = por %p97, %p98
      %p100 = scmp.ne.s32.totalorder %s92, %s95
      %p101 = scmp.eq.s32.totalorder %s16, 0
      %p102 = por %p100, %p101
      %p103 = scmp.ne.s32.totalorder %s92, %s95
      %p104 = scmp.eq.s32.totalorder %s21, 1
      %p105 = por %p103, %p104
      %p106 = scmp.ne.s32.totalorder %s95, %s96
      %p107 = scmp.eq.s32.totalorder %s21, 0
      %p108 = por %p106, %p107
      %p109 = scmp.ne.s32.totalorder %s95, %s96
      %p110 = scmp.eq.s32.totalorder %s22, 1
      %p111 = por %p109, %p110
      %p113 = scmp.ne.s32.totalorder %s96, %s112
      %p114 = scmp.eq.s32.totalorder %s22, 0
      %p115 = por %p113, %p114
      %s116 = ssub.s32 %s23, %s35
      %s117 = ssub.s32 %s24, %s31
      %s118 = sor.u32 %s116, %s117
      %p119 = scmp.eq.s32.totalorder %s118, 0
      %s121 = sadd.s32 %s120, 1
      %s122 = scalar_select %p119, %s120, %s121
      %p125 = pneg %p119
      %p126 = scmp.eq.s32.totalorder %s16, 1
      %p127 = por %p125, %p126
      %p128 = scmp.ne.s32.totalorder %s120, %s123
      %p129 = scmp.eq.s32.totalorder %s16, 0
      %p130 = por %p128, %p129
      %p131 = scmp.ne.s32.totalorder %s120, %s123
      %p132 = scmp.eq.s32.totalorder %s21, 1
      %p133 = por %p131, %p132
      %p134 = scmp.ne.s32.totalorder %s123, %s124
      %p135 = scmp.eq.s32.totalorder %s21, 0
      %p136 = por %p134, %p135
      %p137 = scmp.ne.s32.totalorder %s123, %s124
      %p138 = scmp.eq.s32.totalorder %s22, 1
      %p139 = por %p137, %p138
      %p141 = scmp.ne.s32.totalorder %s124, %s140
      %p142 = scmp.eq.s32.totalorder %s22, 0
      %p143 = por %p141, %p142
      %p144 = scmp.le.s32.totalorder 1, %s16
      %p145 = scmp.lt.s32.totalorder %s16, 3
      %p146 = pnand %p144, %p145
      %p147 = pneg %p146
      // Predicated region
      $region9: #{tpu_custom_call.1} parent=5 // pred_check
        _
      $region10: #{tpu_custom_call.1} parent=5 // pred_check_branch
        %149 = sbr.rel (%p146) target = $region12
      $region11: #{tpu_custom_call.1} parent=5 // pred_region
        %s150 = ssub.s32 %s16, 1
        // Predicated region
        $region13: #{tpu_custom_call.1} parent=11 // pred_check
          %p151 = pneg %p82
        $region14: #{tpu_custom_call.1} parent=11 // pred_check_branch
          %153 = sbr.rel (%p151) target = $region16
        $region15: #{tpu_custom_call.1} parent=11 // pred_region
          %s155 = ssub.s32 256, 256
          %156 = vsyncadd [#allocation7], %s155
          %s157 = smul.addr %s26, 128
          %s158 = scalar_lea.hbm %s1, %s157
          %s159 = sshll.u32 [#allocation6], 4
          %s160 = int_to_ptr.vmem [resolvable:$true] %s159
          %165 = dma.hbm_to_vmem [thread:$0]  %s158, 256, %s160, [#allocation7], 128, 128, 8
        $region16: #{tpu_custom_call.1} parent=11 // pred_fallthru
          _
        // Predicated region
        $region17: #{tpu_custom_call.1} parent=11 // pred_check
          %p166 = pneg %p108
        $region18: #{tpu_custom_call.1} parent=11 // pred_check_branch
          %168 = sbr.rel (%p166) target = $region20
        $region19: #{tpu_custom_call.1} parent=11 // pred_region
          %p169 = scmp.lt.s32.totalorder %s26, 0
          %s170 = scalar_select %p169, %s26, 0
          %s171 = scalar_lea.vmem %s2, %s170
        $region20: #{tpu_custom_call.1} parent=11 // pred_fallthru
          _
      $region12: #{tpu_custom_call.1} parent=5 // pred_fallthru
        _
      %p172 = scmp.lt.s32.totalorder %s16, 2
      // Predicated region
      $region21: #{tpu_custom_call.1} parent=5 // pred_check
        %p173 = pneg %p172
      $region22: #{tpu_custom_call.1} parent=5 // pred_check_branch
        %175 = sbr.rel (%p173) target = $region24
      $region23: #{tpu_custom_call.1} parent=5 // pred_region
        // Predicated region
        $region25: #{tpu_custom_call.1} parent=23 // pred_check
          %p176 = pneg %p50
        $region26: #{tpu_custom_call.1} parent=23 // pred_check_branch
          %178 = sbr.rel (%p176) target = $region28
        $region27: #{tpu_custom_call.1} parent=23 // pred_region
          %s179 = sand.u32 %s40, 1
          %s180 = scalar_lea.sflag [#allocation4], %s179
          %s181 = sand.u32 %s40, 1
          %s182 = smul.addr %s181, 256
          %s183 = scalar_lea.vmem [#allocation3], %s182
          %s185 = ssub.s32 4096, 4096
          %186 = vsyncadd %s180, %s185
          %s187 = smul.addr %s23, 32
          %s188 = sadd.s32 %s24, %s187
          %s189 = smul.addr %s188, 128
          %s190 = scalar_lea.hbm %s0, %s189
          %s191 = sshll.u32 %s183, 4
          %s192 = int_to_ptr.vmem [resolvable:$true] %s191
          %197 = dma.hbm_to_vmem [thread:$0]  %s190, 4096, %s192, %s180, 128, 128, 8
        $region28: #{tpu_custom_call.1} parent=23 // pred_fallthru
          _
      $region24: #{tpu_custom_call.1} parent=5 // pred_fallthru
        _
      %p198 = scmp.le.s32.totalorder 1, %s16
      %p199 = scmp.lt.s32.totalorder %s16, 3
      %p200 = pnand %p198, %p199
      %p201 = pneg %p200
      // Predicated region
      $region29: #{tpu_custom_call.1} parent=5 // pred_check
        _
      $region30: #{tpu_custom_call.1} parent=5 // pred_check_branch
        %203 = sbr.rel (%p200) target = $region32
      $region31: #{tpu_custom_call.1} parent=5 // pred_region
        %s204 = ssub.s32 %s16, 1
        %s205 = sand.u32 %s43, 1
        %s206 = scalar_lea.sflag [#allocation4], %s205
        %s207 = sand.u32 %s43, 1
        %s208 = smul.addr %s207, 256
        %s209 = scalar_lea.vmem [#allocation3], %s208
        // Predicated region
        $region33: #{tpu_custom_call.1} parent=31 // pred_check
          %p210 = pneg %p56
        $region34: #{tpu_custom_call.1} parent=31 // pred_check_branch
          %212 = sbr.rel (%p210) target = $region36
        $region35: #{tpu_custom_call.1} parent=31 // pred_region
          %213 = dma.done %s206, 4096
        $region36: #{tpu_custom_call.1} parent=31 // pred_fallthru
          _
        // Predicated region
        $region37: #{tpu_custom_call.1} parent=31 // pred_check
          %p214 = pneg %p82
        $region38: #{tpu_custom_call.1} parent=31 // pred_check_branch
          %216 = sbr.rel (%p214) target = $region40
        $region39: #{tpu_custom_call.1} parent=31 // pred_region
          %217 = dma.done [#allocation7], 256
        $region40: #{tpu_custom_call.1} parent=31 // pred_fallthru
          _
        %s218 = sand.u32 %s43, 1
        %s219 = scalar_lea.sflag [#allocation4], %s218
        %s220 = sand.u32 %s43, 1
        %s221 = smul.addr %s220, 256
        %s222 = scalar_lea.vmem [#allocation3], %s221
        %p223 = pneg %p56
        %p224 = pneg %p53
        %p225 = pneg %p82
        %p226 = pneg %p79
        %p227 = scmp.lt.s32.totalorder %s26, 0
        %s228 = scalar_select %p227, %s26, 0
        %s229 = scalar_lea.vmem %s2, %s228
        %p230 = pneg %p108
        %p231 = pneg %p105
        %p232 = pneg %p136
        %p233 = pneg %p133
        %s234 = sand.u32 %s123, 1
        %s235 = scalar_lea.sflag [#allocation5], %s234
        %s236 = sand.u32 %s123, 1
        %s237 = smul.addr %s236, 256
        %s238 = scalar_lea.vmem [#allocation8], %s237
        %p239 = scmp.lt.s32.totalorder %s26, 0
        %s240 = scalar_select %p239, %s26, 0
        %s241 = scalar_lea.vmem %s2, %s240
        %242 = vst [vmem:[#allocation2] sm:$0xff] 0.0
        %243 = vst [vmem:[#allocation2 + $0x8] sm:$0xff] 0.0
        %244 = vst [vmem:[#allocation2 + $0x10] sm:$0xff] 0.0
        %245 = vst [vmem:[#allocation2 + $0x18] sm:$0xff] 0.0
        %s246 = scalar_lea.vmem [#allocation2], 544
        %247 = vst [vmem:[%s246] sm:$0xff] 0.0
        %248 = vst [vmem:[%s246 + $0x8] sm:$0xff] 0.0
        %249 = vst [vmem:[%s246 + $0x10] sm:$0xff] 0.0
        %250 = vst [vmem:[%s246 + $0x18] sm:$0xff] 0.0
        %s251 = scalar_lea.vmem [#allocation2], 32
        %252 = vst [vmem:[%s251] sm:$0xff] 0.0
        %253 = vst [vmem:[%s251 + $0x20] sm:$0xff] 0.0
        %254 = vst [vmem:[%s251 + $0x40] sm:$0xff] 0.0
        %255 = vst [vmem:[%s251 + $0x60] sm:$0xff] 0.0
        %256 = vst [vmem:[%s251 + $0x80] sm:$0xff] 0.0
        %257 = vst [vmem:[%s251 + $0xa0] sm:$0xff] 0.0
        %258 = vst [vmem:[%s251 + $0xc0] sm:$0xff] 0.0
        %259 = vst [vmem:[%s251 + $0xe0] sm:$0xff] 0.0
        %260 = vst [vmem:[%s251 + $0x100] sm:$0xff] 0.0
        %261 = vst [vmem:[%s251 + $0x120] sm:$0xff] 0.0
        %262 = vst [vmem:[%s251 + $0x140] sm:$0xff] 0.0
        %263 = vst [vmem:[%s251 + $0x160] sm:$0xff] 0.0
        %264 = vst [vmem:[%s251 + $0x180] sm:$0xff] 0.0
        %265 = vst [vmem:[%s251 + $0x1a0] sm:$0xff] 0.0
        %266 = vst [vmem:[%s251 + $0x1c0] sm:$0xff] 0.0
        %267 = vst [vmem:[%s251 + $0x1e0] sm:$0xff] 0.0
        %268 = vst [vmem:[%s251 + $0x18] sm:$0xff] 0.0
        %269 = vst [vmem:[%s251 + $0x38] sm:$0xff] 0.0
        %270 = vst [vmem:[%s251 + $0x58] sm:$0xff] 0.0
        %271 = vst [vmem:[%s251 + $0x78] sm:$0xff] 0.0
        %272 = vst [vmem:[%s251 + $0x98] sm:$0xff] 0.0
        %273 = vst [vmem:[%s251 + $0xb8] sm:$0xff] 0.0
        %274 = vst [vmem:[%s251 + $0xd8] sm:$0xff] 0.0
        %275 = vst [vmem:[%s251 + $0xf8] sm:$0xff] 0.0
        %276 = vst [vmem:[%s251 + $0x118] sm:$0xff] 0.0
        %277 = vst [vmem:[%s251 + $0x138] sm:$0xff] 0.0
        %278 = vst [vmem:[%s251 + $0x158] sm:$0xff] 0.0
        %279 = vst [vmem:[%s251 + $0x178] sm:$0xff] 0.0
        %280 = vst [vmem:[%s251 + $0x198] sm:$0xff] 0.0
        %281 = vst [vmem:[%s251 + $0x1b8] sm:$0xff] 0.0
        %282 = vst [vmem:[%s251 + $0x1d8] sm:$0xff] 0.0
        %283 = vst [vmem:[%s251 + $0x1f8] sm:$0xff] 0.0
        %v284 = vld [vmem:[%s209] sm:$0xff]
        %v285 = vld [vmem:[%s209 + $0x8] sm:$0xff]
        %v286 = vld [vmem:[%s209 + $0x10] sm:$0xff]
        %v287 = vld [vmem:[%s209 + $0x18] sm:$0xff]
        %v288 = vld [vmem:[%s209 + $0x20] sm:$0xff]
        %v289 = vld [vmem:[%s209 + $0x28] sm:$0xff]
        %v290 = vld [vmem:[%s209 + $0x30] sm:$0xff]
        %v291 = vld [vmem:[%s209 + $0x38] sm:$0xff]
        %v292 = vld [vmem:[%s209 + $0x40] sm:$0xff]
        %v293 = vld [vmem:[%s209 + $0x48] sm:$0xff]
        %v294 = vld [vmem:[%s209 + $0x50] sm:$0xff]
        %v295 = vld [vmem:[%s209 + $0x58] sm:$0xff]
        %v296 = vld [vmem:[%s209 + $0x60] sm:$0xff]
        %v297 = vld [vmem:[%s209 + $0x68] sm:$0xff]
        %v298 = vld [vmem:[%s209 + $0x70] sm:$0xff]
        %v299 = vld [vmem:[%s209 + $0x78] sm:$0xff]
        %v300 = vld [vmem:[%s209 + $0x80] sm:$0xff]
        %v301 = vld [vmem:[%s209 + $0x88] sm:$0xff]
        %v302 = vld [vmem:[%s209 + $0x90] sm:$0xff]
        %v303 = vld [vmem:[%s209 + $0x98] sm:$0xff]
        %v304 = vld [vmem:[%s209 + $0xa0] sm:$0xff]
        %v305 = vld [vmem:[%s209 + $0xa8] sm:$0xff]
        %v306 = vld [vmem:[%s209 + $0xb0] sm:$0xff]
        %v307 = vld [vmem:[%s209 + $0xb8] sm:$0xff]
        %v308 = vld [vmem:[%s209 + $0xc0] sm:$0xff]
        %v309 = vld [vmem:[%s209 + $0xc8] sm:$0xff]
        %v310 = vld [vmem:[%s209 + $0xd0] sm:$0xff]
        %v311 = vld [vmem:[%s209 + $0xd8] sm:$0xff]
        %v312 = vld [vmem:[%s209 + $0xe0] sm:$0xff]
        %v313 = vld [vmem:[%s209 + $0xe8] sm:$0xff]
        %v314 = vld [vmem:[%s209 + $0xf0] sm:$0xff]
        %v315 = vld [vmem:[%s209 + $0xf8] sm:$0xff]
        %316 = vst [vmem:[%s251 + $0x8] sm:$0xff] %v284
        %317 = vst [vmem:[%s251 + $0x10] sm:$0xff] %v285
        %318 = vst [vmem:[%s251 + $0x28] sm:$0xff] %v286
        %319 = vst [vmem:[%s251 + $0x30] sm:$0xff] %v287
        %320 = vst [vmem:[%s251 + $0x48] sm:$0xff] %v288
        %321 = vst [vmem:[%s251 + $0x50] sm:$0xff] %v289
        %322 = vst [vmem:[%s251 + $0x68] sm:$0xff] %v290
        %323 = vst [vmem:[%s251 + $0x70] sm:$0xff] %v291
        %324 = vst [vmem:[%s251 + $0x88] sm:$0xff] %v292
        %325 = vst [vmem:[%s251 + $0x90] sm:$0xff] %v293
        %326 = vst [vmem:[%s251 + $0xa8] sm:$0xff] %v294
        %327 = vst [vmem:[%s251 + $0xb0] sm:$0xff] %v295
        %328 = vst [vmem:[%s251 + $0xc8] sm:$0xff] %v296
        %329 = vst [vmem:[%s251 + $0xd0] sm:$0xff] %v297
        %330 = vst [vmem:[%s251 + $0xe8] sm:$0xff] %v298
        %331 = vst [vmem:[%s251 + $0xf0] sm:$0xff] %v299
        %332 = vst [vmem:[%s251 + $0x108] sm:$0xff] %v300
        %333 = vst [vmem:[%s251 + $0x110] sm:$0xff] %v301
        %334 = vst [vmem:[%s251 + $0x128] sm:$0xff] %v302
        %335 = vst [vmem:[%s251 + $0x130] sm:$0xff] %v303
        %336 = vst [vmem:[%s251 + $0x148] sm:$0xff] %v304
        %337 = vst [vmem:[%s251 + $0x150] sm:$0xff] %v305
        %338 = vst [vmem:[%s251 + $0x168] sm:$0xff] %v306
        %339 = vst [vmem:[%s251 + $0x170] sm:$0xff] %v307
        %340 = vst [vmem:[%s251 + $0x188] sm:$0xff] %v308
        %341 = vst [vmem:[%s251 + $0x190] sm:$0xff] %v309
        %342 = vst [vmem:[%s251 + $0x1a8] sm:$0xff] %v310
        %343 = vst [vmem:[%s251 + $0x1b0] sm:$0xff] %v311
        %344 = vst [vmem:[%s251 + $0x1c8] sm:$0xff] %v312
        %345 = vst [vmem:[%s251 + $0x1d0] sm:$0xff] %v313
        %346 = vst [vmem:[%s251 + $0x1e8] sm:$0xff] %v314
        %347 = vst [vmem:[%s251 + $0x1f0] sm:$0xff] %v315
        %v348 = vld [vmem:[#allocation2 + $0x7] sm:$0xff]
        %v349 = vld [vmem:[#allocation2 + $0xf] sm:$0xff]
        %v350 = vld [vmem:[#allocation2 + $0x27] sm:$0xff]
        %v351 = vld [vmem:[#allocation2 + $0x2f] sm:$0xff]
        %v352 = vld [vmem:[#allocation2 + $0x47] sm:$0xff]
        %v353 = vld [vmem:[#allocation2 + $0x4f] sm:$0xff]
        %v354 = vld [vmem:[#allocation2 + $0x67] sm:$0xff]
        %v355 = vld [vmem:[#allocation2 + $0x6f] sm:$0xff]
        %v356 = vld [vmem:[#allocation2 + $0x87] sm:$0xff]
        %v357 = vld [vmem:[#allocation2 + $0x8f] sm:$0xff]
        %v358 = vld [vmem:[#allocation2 + $0xa7] sm:$0xff]
        %v359 = vld [vmem:[#allocation2 + $0xaf] sm:$0xff]
        %v360 = vld [vmem:[#allocation2 + $0xc7] sm:$0xff]
        %v361 = vld [vmem:[#allocation2 + $0xcf] sm:$0xff]
        %v362 = vld [vmem:[#allocation2 + $0xe7] sm:$0xff]
        %v363 = vld [vmem:[#allocation2 + $0xef] sm:$0xff]
        %v364 = vld [vmem:[#allocation2 + $0x107] sm:$0xff]
        %v365 = vld [vmem:[#allocation2 + $0x10f] sm:$0xff]
        %v366 = vld [vmem:[#allocation2 + $0x127] sm:$0xff]
        %v367 = vld [vmem:[#allocation2 + $0x12f] sm:$0xff]
        %v368 = vld [vmem:[#allocation2 + $0x147] sm:$0xff]
        %v369 = vld [vmem:[#allocation2 + $0x14f] sm:$0xff]
        %v370 = vld [vmem:[#allocation2 + $0x167] sm:$0xff]
        %v371 = vld [vmem:[#allocation2 + $0x16f] sm:$0xff]
        %v372 = vld [vmem:[#allocation2 + $0x187] sm:$0xff]
        %v373 = vld [vmem:[#allocation2 + $0x18f] sm:$0xff]
        %v374 = vld [vmem:[#allocation2 + $0x1a7] sm:$0xff]
        %v375 = vld [vmem:[#allocation2 + $0x1af] sm:$0xff]
        %v376 = vld [vmem:[#allocation2 + $0x1c7] sm:$0xff]
        %v377 = vld [vmem:[#allocation2 + $0x1cf] sm:$0xff]
        %v378 = vld [vmem:[#allocation2 + $0x1e7] sm:$0xff]
        %v379 = vld [vmem:[#allocation2 + $0x1ef] sm:$0xff]
        %v380 = vld [vmem:[#allocation6] sm:$0x1]
        %v381 = vlaneseq
        %v382 = vshrl.u32 %v381, 7
        %v383 = vsub.s32 0, %v382
        %v384 = vrot.slane %v380, %v383
        %v385 = vmul.f32 %v348, %v384
        %v386 = vmul.f32 %v349, %v384
        %v387 = vmul.f32 %v350, %v384
        %v388 = vmul.f32 %v351, %v384
        %v389 = vmul.f32 %v352, %v384
        %v390 = vmul.f32 %v353, %v384
        %v391 = vmul.f32 %v354, %v384
        %v392 = vmul.f32 %v355, %v384
        %v393 = vmul.f32 %v356, %v384
        %v394 = vmul.f32 %v357, %v384
        %v395 = vmul.f32 %v358, %v384
        %v396 = vmul.f32 %v359, %v384
        %v397 = vmul.f32 %v360, %v384
        %v398 = vmul.f32 %v361, %v384
        %v399 = vmul.f32 %v362, %v384
        %v400 = vmul.f32 %v363, %v384
        %v401 = vmul.f32 %v364, %v384
        %v402 = vmul.f32 %v365, %v384
        %v403 = vmul.f32 %v366, %v384
        %v404 = vmul.f32 %v367, %v384
        %v405 = vmul.f32 %v368, %v384
        %v406 = vmul.f32 %v369, %v384
        %v407 = vmul.f32 %v370, %v384
        %v408 = vmul.f32 %v371, %v384
        %v409 = vmul.f32 %v372, %v384
        %v410 = vmul.f32 %v373, %v384
        %v411 = vmul.f32 %v374, %v384
        %v412 = vmul.f32 %v375, %v384
        %v413 = vmul.f32 %v376, %v384
        %v414 = vmul.f32 %v377, %v384
        %v415 = vmul.f32 %v378, %v384
        %v416 = vmul.f32 %v379, %v384
        %v417 = vadd.f32 %v385, 0.0
        %v418 = vadd.f32 %v386, 0.0
        %v419 = vadd.f32 %v387, 0.0
        %v420 = vadd.f32 %v388, 0.0
        %v421 = vadd.f32 %v389, 0.0
        %v422 = vadd.f32 %v390, 0.0
        %v423 = vadd.f32 %v391, 0.0
        %v424 = vadd.f32 %v392, 0.0
        %v425 = vadd.f32 %v393, 0.0
        %v426 = vadd.f32 %v394, 0.0
        %v427 = vadd.f32 %v395, 0.0
        %v428 = vadd.f32 %v396, 0.0
        %v429 = vadd.f32 %v397, 0.0
        %v430 = vadd.f32 %v398, 0.0
        %v431 = vadd.f32 %v399, 0.0
        %v432 = vadd.f32 %v400, 0.0
        %v433 = vadd.f32 %v401, 0.0
        %v434 = vadd.f32 %v402, 0.0
        %v435 = vadd.f32 %v403, 0.0
        %v436 = vadd.f32 %v404, 0.0
        %v437 = vadd.f32 %v405, 0.0
        %v438 = vadd.f32 %v406, 0.0
        %v439 = vadd.f32 %v407, 0.0
        %v440 = vadd.f32 %v408, 0.0
        %v441 = vadd.f32 %v409, 0.0
        %v442 = vadd.f32 %v410, 0.0
        %v443 = vadd.f32 %v411, 0.0
        %v444 = vadd.f32 %v412, 0.0
        %v445 = vadd.f32 %v413, 0.0
        %v446 = vadd.f32 %v414, 0.0
        %v447 = vadd.f32 %v415, 0.0
        %v448 = vadd.f32 %v416, 0.0
        %v449 = vld [vmem:[#allocation2 + $0x8] sm:$0xff]
        %v450 = vld [vmem:[#allocation2 + $0x10] sm:$0xff]
        %v451 = vld [vmem:[#allocation2 + $0x28] sm:$0xff]
        %v452 = vld [vmem:[#allocation2 + $0x30] sm:$0xff]
        %v453 = vld [vmem:[#allocation2 + $0x48] sm:$0xff]
        %v454 = vld [vmem:[#allocation2 + $0x50] sm:$0xff]
        %v455 = vld [vmem:[#allocation2 + $0x68] sm:$0xff]
        %v456 = vld [vmem:[#allocation2 + $0x70] sm:$0xff]
        %v457 = vld [vmem:[#allocation2 + $0x88] sm:$0xff]
        %v458 = vld [vmem:[#allocation2 + $0x90] sm:$0xff]
        %v459 = vld [vmem:[#allocation2 + $0xa8] sm:$0xff]
        %v460 = vld [vmem:[#allocation2 + $0xb0] sm:$0xff]
        %v461 = vld [vmem:[#allocation2 + $0xc8] sm:$0xff]
        %v462 = vld [vmem:[#allocation2 + $0xd0] sm:$0xff]
        %v463 = vld [vmem:[#allocation2 + $0xe8] sm:$0xff]
        %v464 = vld [vmem:[#allocation2 + $0xf0] sm:$0xff]
        %v465 = vld [vmem:[#allocation2 + $0x108] sm:$0xff]
        %v466 = vld [vmem:[#allocation2 + $0x110] sm:$0xff]
        %v467 = vld [vmem:[#allocation2 + $0x128] sm:$0xff]
        %v468 = vld [vmem:[#allocation2 + $0x130] sm:$0xff]
        %v469 = vld [vmem:[#allocation2 + $0x148] sm:$0xff]
        %v470 = vld [vmem:[#allocation2 + $0x150] sm:$0xff]
        %v471 = vld [vmem:[#allocation2 + $0x168] sm:$0xff]
        %v472 = vld [vmem:[#allocation2 + $0x170] sm:$0xff]
        %v473 = vld [vmem:[#allocation2 + $0x188] sm:$0xff]
        %v474 = vld [vmem:[#allocation2 + $0x190] sm:$0xff]
        %v475 = vld [vmem:[#allocation2 + $0x1a8] sm:$0xff]
        %v476 = vld [vmem:[#allocation2 + $0x1b0] sm:$0xff]
        %v477 = vld [vmem:[#allocation2 + $0x1c8] sm:$0xff]
        %v478 = vld [vmem:[#allocation2 + $0x1d0] sm:$0xff]
        %v479 = vld [vmem:[#allocation2 + $0x1e8] sm:$0xff]
        %v480 = vld [vmem:[#allocation2 + $0x1f0] sm:$0xff]
        %v481 = vld [vmem:[#allocation6 + $0x1] sm:$0x1]
        %v482 = vlaneseq
        %v483 = vshrl.u32 %v482, 7
        %v484 = vsub.s32 0, %v483
        %v485 = vrot.slane %v481, %v484
        %v486 = vmul.f32 %v449, %v485
        %v487 = vmul.f32 %v450, %v485
        %v488 = vmul.f32 %v451, %v485
        %v489 = vmul.f32 %v452, %v485
        %v490 = vmul.f32 %v453, %v485
        %v491 = vmul.f32 %v454, %v485
        %v492 = vmul.f32 %v455, %v485
        %v493 = vmul.f32 %v456, %v485
        %v494 = vmul.f32 %v457, %v485
        %v495 = vmul.f32 %v458, %v485
        %v496 = vmul.f32 %v459, %v485
        %v497 = vmul.f32 %v460, %v485
        %v498 = vmul.f32 %v461, %v485
        %v499 = vmul.f32 %v462, %v485
        %v500 = vmul.f32 %v463, %v485
        %v501 = vmul.f32 %v464, %v485
        %v502 = vmul.f32 %v465, %v485
        %v503 = vmul.f32 %v466, %v485
        %v504 = vmul.f32 %v467, %v485
        %v505 = vmul.f32 %v468, %v485
        %v506 = vmul.f32 %v469, %v485
        %v507 = vmul.f32 %v470, %v485
        %v508 = vmul.f32 %v471, %v485
        %v509 = vmul.f32 %v472, %v485
        %v510 = vmul.f32 %v473, %v485
        %v511 = vmul.f32 %v474, %v485
        %v512 = vmul.f32 %v475, %v485
        %v513 = vmul.f32 %v476, %v485
        %v514 = vmul.f32 %v477, %v485
        %v515 = vmul.f32 %v478, %v485
        %v516 = vmul.f32 %v479, %v485
        %v517 = vmul.f32 %v480, %v485
        %v518 = vadd.f32 %v417, %v486
        %v519 = vadd.f32 %v418, %v487
        %v520 = vadd.f32 %v419, %v488
        %v521 = vadd.f32 %v420, %v489
        %v522 = vadd.f32 %v421, %v490
        %v523 = vadd.f32 %v422, %v491
        %v524 = vadd.f32 %v423, %v492
        %v525 = vadd.f32 %v424, %v493
        %v526 = vadd.f32 %v425, %v494
        %v527 = vadd.f32 %v426, %v495
        %v528 = vadd.f32 %v427, %v496
        %v529 = vadd.f32 %v428, %v497
        %v530 = vadd.f32 %v429, %v498
        %v531 = vadd.f32 %v430, %v499
        %v532 = vadd.f32 %v431, %v500
        %v533 = vadd.f32 %v432, %v501
        %v534 = vadd.f32 %v433, %v502
        %v535 = vadd.f32 %v434, %v503
        %v536 = vadd.f32 %v435, %v504
        %v537 = vadd.f32 %v436, %v505
        %v538 = vadd.f32 %v437, %v506
        %v539 = vadd.f32 %v438, %v507
        %v540 = vadd.f32 %v439, %v508
        %v541 = vadd.f32 %v440, %v509
        %v542 = vadd.f32 %v441, %v510
        %v543 = vadd.f32 %v442, %v511
        %v544 = vadd.f32 %v443, %v512
        %v545 = vadd.f32 %v444, %v513
        %v546 = vadd.f32 %v445, %v514
        %v547 = vadd.f32 %v446, %v515
        %v548 = vadd.f32 %v447, %v516
        %v549 = vadd.f32 %v448, %v517
        %v550 = vld [vmem:[#allocation2 + $0x9] sm:$0xff]
        %v551 = vld [vmem:[#allocation2 + $0x11] sm:$0xff]
        %v552 = vld [vmem:[#allocation2 + $0x29] sm:$0xff]
        %v553 = vld [vmem:[#allocation2 + $0x31] sm:$0xff]
        %v554 = vld [vmem:[#allocation2 + $0x49] sm:$0xff]
        %v555 = vld [vmem:[#allocation2 + $0x51] sm:$0xff]
        %v556 = vld [vmem:[#allocation2 + $0x69] sm:$0xff]
        %v557 = vld [vmem:[#allocation2 + $0x71] sm:$0xff]
        %v558 = vld [vmem:[#allocation2 + $0x89] sm:$0xff]
        %v559 = vld [vmem:[#allocation2 + $0x91] sm:$0xff]
        %v560 = vld [vmem:[#allocation2 + $0xa9] sm:$0xff]
        %v561 = vld [vmem:[#allocation2 + $0xb1] sm:$0xff]
        %v562 = vld [vmem:[#allocation2 + $0xc9] sm:$0xff]
        %v563 = vld [vmem:[#allocation2 + $0xd1] sm:$0xff]
        %v564 = vld [vmem:[#allocation2 + $0xe9] sm:$0xff]
        %v565 = vld [vmem:[#allocation2 + $0xf1] sm:$0xff]
        %v566 = vld [vmem:[#allocation2 + $0x109] sm:$0xff]
        %v567 = vld [vmem:[#allocation2 + $0x111] sm:$0xff]
        %v568 = vld [vmem:[#allocation2 + $0x129] sm:$0xff]
        %v569 = vld [vmem:[#allocation2 + $0x131] sm:$0xff]
        %v570 = vld [vmem:[#allocation2 + $0x149] sm:$0xff]
        %v571 = vld [vmem:[#allocation2 + $0x151] sm:$0xff]
        %v572 = vld [vmem:[#allocation2 + $0x169] sm:$0xff]
        %v573 = vld [vmem:[#allocation2 + $0x171] sm:$0xff]
        %v574 = vld [vmem:[#allocation2 + $0x189] sm:$0xff]
        %v575 = vld [vmem:[#allocation2 + $0x191] sm:$0xff]
        %v576 = vld [vmem:[#allocation2 + $0x1a9] sm:$0xff]
        %v577 = vld [vmem:[#allocation2 + $0x1b1] sm:$0xff]
        %v578 = vld [vmem:[#allocation2 + $0x1c9] sm:$0xff]
        %v579 = vld [vmem:[#allocation2 + $0x1d1] sm:$0xff]
        %v580 = vld [vmem:[#allocation2 + $0x1e9] sm:$0xff]
        %v581 = vld [vmem:[#allocation2 + $0x1f1] sm:$0xff]
        %v582 = vld [vmem:[#allocation6 + $0x2] sm:$0x1]
        %v583 = vlaneseq
        %v584 = vshrl.u32 %v583, 7
        %v585 = vsub.s32 0, %v584
        %v586 = vrot.slane %v582, %v585
        %v587 = vmul.f32 %v550, %v586
        %v588 = vmul.f32 %v551, %v586
        %v589 = vmul.f32 %v552, %v586
        %v590 = vmul.f32 %v553, %v586
        %v591 = vmul.f32 %v554, %v586
        %v592 = vmul.f32 %v555, %v586
        %v593 = vmul.f32 %v556, %v586
        %v594 = vmul.f32 %v557, %v586
        %v595 = vmul.f32 %v558, %v586
        %v596 = vmul.f32 %v559, %v586
        %v597 = vmul.f32 %v560, %v586
        %v598 = vmul.f32 %v561, %v586
        %v599 = vmul.f32 %v562, %v586
        %v600 = vmul.f32 %v563, %v586
        %v601 = vmul.f32 %v564, %v586
        %v602 = vmul.f32 %v565, %v586
        %v603 = vmul.f32 %v566, %v586
        %v604 = vmul.f32 %v567, %v586
        %v605 = vmul.f32 %v568, %v586
        %v606 = vmul.f32 %v569, %v586
        %v607 = vmul.f32 %v570, %v586
        %v608 = vmul.f32 %v571, %v586
        %v609 = vmul.f32 %v572, %v586
        %v610 = vmul.f32 %v573, %v586
        %v611 = vmul.f32 %v574, %v586
        %v612 = vmul.f32 %v575, %v586
        %v613 = vmul.f32 %v576, %v586
        %v614 = vmul.f32 %v577, %v586
        %v615 = vmul.f32 %v578, %v586
        %v616 = vmul.f32 %v579, %v586
        %v617 = vmul.f32 %v580, %v586
        %v618 = vmul.f32 %v581, %v586
        %v619 = vadd.f32 %v518, %v587
        %v620 = vadd.f32 %v519, %v588
        %v621 = vadd.f32 %v520, %v589
        %v622 = vadd.f32 %v521, %v590
        %v623 = vadd.f32 %v522, %v591
        %v624 = vadd.f32 %v523, %v592
        %v625 = vadd.f32 %v524, %v593
        %v626 = vadd.f32 %v525, %v594
        %v627 = vadd.f32 %v526, %v595
        %v628 = vadd.f32 %v527, %v596
        %v629 = vadd.f32 %v528, %v597
        %v630 = vadd.f32 %v529, %v598
        %v631 = vadd.f32 %v530, %v599
        %v632 = vadd.f32 %v531, %v600
        %v633 = vadd.f32 %v532, %v601
        %v634 = vadd.f32 %v533, %v602
        %v635 = vadd.f32 %v534, %v603
        %v636 = vadd.f32 %v535, %v604
        %v637 = vadd.f32 %v536, %v605
        %v638 = vadd.f32 %v537, %v606
        %v639 = vadd.f32 %v538, %v607
        %v640 = vadd.f32 %v539, %v608
        %v641 = vadd.f32 %v540, %v609
        %v642 = vadd.f32 %v541, %v610
        %v643 = vadd.f32 %v542, %v611
        %v644 = vadd.f32 %v543, %v612
        %v645 = vadd.f32 %v544, %v613
        %v646 = vadd.f32 %v545, %v614
        %v647 = vadd.f32 %v546, %v615
        %v648 = vadd.f32 %v547, %v616
        %v649 = vadd.f32 %v548, %v617
        %v650 = vadd.f32 %v549, %v618
        %v651 = vld [vmem:[%s251 + $0x7] sm:$0xff]
        %v652 = vld [vmem:[%s251 + $0xf] sm:$0xff]
        %v653 = vld [vmem:[%s251 + $0x27] sm:$0xff]
        %v654 = vld [vmem:[%s251 + $0x2f] sm:$0xff]
        %v655 = vld [vmem:[%s251 + $0x47] sm:$0xff]
        %v656 = vld [vmem:[%s251 + $0x4f] sm:$0xff]
        %v657 = vld [vmem:[%s251 + $0x67] sm:$0xff]
        %v658 = vld [vmem:[%s251 + $0x6f] sm:$0xff]
        %v659 = vld [vmem:[%s251 + $0x87] sm:$0xff]
        %v660 = vld [vmem:[%s251 + $0x8f] sm:$0xff]
        %v661 = vld [vmem:[%s251 + $0xa7] sm:$0xff]
        %v662 = vld [vmem:[%s251 + $0xaf] sm:$0xff]
        %v663 = vld [vmem:[%s251 + $0xc7] sm:$0xff]
        %v664 = vld [vmem:[%s251 + $0xcf] sm:$0xff]
        %v665 = vld [vmem:[%s251 + $0xe7] sm:$0xff]
        %v666 = vld [vmem:[%s251 + $0xef] sm:$0xff]
        %v667 = vld [vmem:[%s251 + $0x107] sm:$0xff]
        %v668 = vld [vmem:[%s251 + $0x10f] sm:$0xff]
        %v669 = vld [vmem:[%s251 + $0x127] sm:$0xff]
        %v670 = vld [vmem:[%s251 + $0x12f] sm:$0xff]
        %v671 = vld [vmem:[%s251 + $0x147] sm:$0xff]
        %v672 = vld [vmem:[%s251 + $0x14f] sm:$0xff]
        %v673 = vld [vmem:[%s251 + $0x167] sm:$0xff]
        %v674 = vld [vmem:[%s251 + $0x16f] sm:$0xff]
        %v675 = vld [vmem:[%s251 + $0x187] sm:$0xff]
        %v676 = vld [vmem:[%s251 + $0x18f] sm:$0xff]
        %v677 = vld [vmem:[%s251 + $0x1a7] sm:$0xff]
        %v678 = vld [vmem:[%s251 + $0x1af] sm:$0xff]
        %v679 = vld [vmem:[%s251 + $0x1c7] sm:$0xff]
        %v680 = vld [vmem:[%s251 + $0x1cf] sm:$0xff]
        %v681 = vld [vmem:[%s251 + $0x1e7] sm:$0xff]
        %v682 = vld [vmem:[%s251 + $0x1ef] sm:$0xff]
        %v683 = vld [vmem:[#allocation6 + $0x3] sm:$0x1]
        %v684 = vlaneseq
        %v685 = vshrl.u32 %v684, 7
        %v686 = vsub.s32 0, %v685
        %v687 = vrot.slane %v683, %v686
        %v688 = vmul.f32 %v651, %v687
        %v689 = vmul.f32 %v652, %v687
        %v690 = vmul.f32 %v653, %v687
        %v691 = vmul.f32 %v654, %v687
        %v692 = vmul.f32 %v655, %v687
        %v693 = vmul.f32 %v656, %v687
        %v694 = vmul.f32 %v657, %v687
        %v695 = vmul.f32 %v658, %v687
        %v696 = vmul.f32 %v659, %v687
        %v697 = vmul.f32 %v660, %v687
        %v698 = vmul.f32 %v661, %v687
        %v699 = vmul.f32 %v662, %v687
        %v700 = vmul.f32 %v663, %v687
        %v701 = vmul.f32 %v664, %v687
        %v702 = vmul.f32 %v665, %v687
        %v703 = vmul.f32 %v666, %v687
        %v704 = vmul.f32 %v667, %v687
        %v705 = vmul.f32 %v668, %v687
        %v706 = vmul.f32 %v669, %v687
        %v707 = vmul.f32 %v670, %v687
        %v708 = vmul.f32 %v671, %v687
        %v709 = vmul.f32 %v672, %v687
        %v710 = vmul.f32 %v673, %v687
        %v711 = vmul.f32 %v674, %v687
        %v712 = vmul.f32 %v675, %v687
        %v713 = vmul.f32 %v676, %v687
        %v714 = vmul.f32 %v677, %v687
        %v715 = vmul.f32 %v678, %v687
        %v716 = vmul.f32 %v679, %v687
        %v717 = vmul.f32 %v680, %v687
        %v718 = vmul.f32 %v681, %v687
        %v719 = vmul.f32 %v682, %v687
        %v720 = vadd.f32 %v619, %v688
        %v721 = vadd.f32 %v620, %v689
        %v722 = vadd.f32 %v621, %v690
        %v723 = vadd.f32 %v622, %v691
        %v724 = vadd.f32 %v623, %v692
        %v725 = vadd.f32 %v624, %v693
        %v726 = vadd.f32 %v625, %v694
        %v727 = vadd.f32 %v626, %v695
        %v728 = vadd.f32 %v627, %v696
        %v729 = vadd.f32 %v628, %v697
        %v730 = vadd.f32 %v629, %v698
        %v731 = vadd.f32 %v630, %v699
        %v732 = vadd.f32 %v631, %v700
        %v733 = vadd.f32 %v632, %v701
        %v734 = vadd.f32 %v633, %v702
        %v735 = vadd.f32 %v634, %v703
        %v736 = vadd.f32 %v635, %v704
        %v737 = vadd.f32 %v636, %v705
        %v738 = vadd.f32 %v637, %v706
        %v739 = vadd.f32 %v638, %v707
        %v740 = vadd.f32 %v639, %v708
        %v741 = vadd.f32 %v640, %v709
        %v742 = vadd.f32 %v641, %v710
        %v743 = vadd.f32 %v642, %v711
        %v744 = vadd.f32 %v643, %v712
        %v745 = vadd.f32 %v644, %v713
        %v746 = vadd.f32 %v645, %v714
        %v747 = vadd.f32 %v646, %v715
        %v748 = vadd.f32 %v647, %v716
        %v749 = vadd.f32 %v648, %v717
        %v750 = vadd.f32 %v649, %v718
        %v751 = vadd.f32 %v650, %v719
        %v752 = vld [vmem:[%s251 + $0x8] sm:$0xff]
        %v753 = vld [vmem:[%s251 + $0x10] sm:$0xff]
        %v754 = vld [vmem:[%s251 + $0x28] sm:$0xff]
        %v755 = vld [vmem:[%s251 + $0x30] sm:$0xff]
        %v756 = vld [vmem:[%s251 + $0x48] sm:$0xff]
        %v757 = vld [vmem:[%s251 + $0x50] sm:$0xff]
        %v758 = vld [vmem:[%s251 + $0x68] sm:$0xff]
        %v759 = vld [vmem:[%s251 + $0x70] sm:$0xff]
        %v760 = vld [vmem:[%s251 + $0x88] sm:$0xff]
        %v761 = vld [vmem:[%s251 + $0x90] sm:$0xff]
        %v762 = vld [vmem:[%s251 + $0xa8] sm:$0xff]
        %v763 = vld [vmem:[%s251 + $0xb0] sm:$0xff]
        %v764 = vld [vmem:[%s251 + $0xc8] sm:$0xff]
        %v765 = vld [vmem:[%s251 + $0xd0] sm:$0xff]
        %v766 = vld [vmem:[%s251 + $0xe8] sm:$0xff]
        %v767 = vld [vmem:[%s251 + $0xf0] sm:$0xff]
        %v768 = vld [vmem:[%s251 + $0x108] sm:$0xff]
        %v769 = vld [vmem:[%s251 + $0x110] sm:$0xff]
        %v770 = vld [vmem:[%s251 + $0x128] sm:$0xff]
        %v771 = vld [vmem:[%s251 + $0x130] sm:$0xff]
        %v772 = vld [vmem:[%s251 + $0x148] sm:$0xff]
        %v773 = vld [vmem:[%s251 + $0x150] sm:$0xff]
        %v774 = vld [vmem:[%s251 + $0x168] sm:$0xff]
        %v775 = vld [vmem:[%s251 + $0x170] sm:$0xff]
        %v776 = vld [vmem:[%s251 + $0x188] sm:$0xff]
        %v777 = vld [vmem:[%s251 + $0x190] sm:$0xff]
        %v778 = vld [vmem:[%s251 + $0x1a8] sm:$0xff]
        %v779 = vld [vmem:[%s251 + $0x1b0] sm:$0xff]
        %v780 = vld [vmem:[%s251 + $0x1c8] sm:$0xff]
        %v781 = vld [vmem:[%s251 + $0x1d0] sm:$0xff]
        %v782 = vld [vmem:[%s251 + $0x1e8] sm:$0xff]
        %v783 = vld [vmem:[%s251 + $0x1f0] sm:$0xff]
        %v784 = vld [vmem:[#allocation6 + $0x4] sm:$0x1]
        %v785 = vlaneseq
        %v786 = vshrl.u32 %v785, 7
        %v787 = vsub.s32 0, %v786
        %v788 = vrot.slane %v784, %v787
        %v789 = vmul.f32 %v752, %v788
        %v790 = vmul.f32 %v753, %v788
        %v791 = vmul.f32 %v754, %v788
        %v792 = vmul.f32 %v755, %v788
        %v793 = vmul.f32 %v756, %v788
        %v794 = vmul.f32 %v757, %v788
        %v795 = vmul.f32 %v758, %v788
        %v796 = vmul.f32 %v759, %v788
        %v797 = vmul.f32 %v760, %v788
        %v798 = vmul.f32 %v761, %v788
        %v799 = vmul.f32 %v762, %v788
        %v800 = vmul.f32 %v763, %v788
        %v801 = vmul.f32 %v764, %v788
        %v802 = vmul.f32 %v765, %v788
        %v803 = vmul.f32 %v766, %v788
        %v804 = vmul.f32 %v767, %v788
        %v805 = vmul.f32 %v768, %v788
        %v806 = vmul.f32 %v769, %v788
        %v807 = vmul.f32 %v770, %v788
        %v808 = vmul.f32 %v771, %v788
        %v809 = vmul.f32 %v772, %v788
        %v810 = vmul.f32 %v773, %v788
        %v811 = vmul.f32 %v774, %v788
        %v812 = vmul.f32 %v775, %v788
        %v813 = vmul.f32 %v776, %v788
        %v814 = vmul.f32 %v777, %v788
        %v815 = vmul.f32 %v778, %v788
        %v816 = vmul.f32 %v779, %v788
        %v817 = vmul.f32 %v780, %v788
        %v818 = vmul.f32 %v781, %v788
        %v819 = vmul.f32 %v782, %v788
        %v820 = vmul.f32 %v783, %v788
        %v821 = vadd.f32 %v720, %v789
        %v822 = vadd.f32 %v721, %v790
        %v823 = vadd.f32 %v722, %v791
        %v824 = vadd.f32 %v723, %v792
        %v825 = vadd.f32 %v724, %v793
        %v826 = vadd.f32 %v725, %v794
        %v827 = vadd.f32 %v726, %v795
        %v828 = vadd.f32 %v727, %v796
        %v829 = vadd.f32 %v728, %v797
        %v830 = vadd.f32 %v729, %v798
        %v831 = vadd.f32 %v730, %v799
        %v832 = vadd.f32 %v731, %v800
        %v833 = vadd.f32 %v732, %v801
        %v834 = vadd.f32 %v733, %v802
        %v835 = vadd.f32 %v734, %v803
        %v836 = vadd.f32 %v735, %v804
        %v837 = vadd.f32 %v736, %v805
        %v838 = vadd.f32 %v737, %v806
        %v839 = vadd.f32 %v738, %v807
        %v840 = vadd.f32 %v739, %v808
        %v841 = vadd.f32 %v740, %v809
        %v842 = vadd.f32 %v741, %v810
        %v843 = vadd.f32 %v742, %v811
        %v844 = vadd.f32 %v743, %v812
        %v845 = vadd.f32 %v744, %v813
        %v846 = vadd.f32 %v745, %v814
        %v847 = vadd.f32 %v746, %v815
        %v848 = vadd.f32 %v747, %v816
        %v849 = vadd.f32 %v748, %v817
        %v850 = vadd.f32 %v749, %v818
        %v851 = vadd.f32 %v750, %v819
        %v852 = vadd.f32 %v751, %v820
        %v853 = vld [vmem:[%s251 + $0x9] sm:$0xff]
        %v854 = vld [vmem:[%s251 + $0x11] sm:$0xff]
        %v855 = vld [vmem:[%s251 + $0x29] sm:$0xff]
        %v856 = vld [vmem:[%s251 + $0x31] sm:$0xff]
        %v857 = vld [vmem:[%s251 + $0x49] sm:$0xff]
        %v858 = vld [vmem:[%s251 + $0x51] sm:$0xff]
        %v859 = vld [vmem:[%s251 + $0x69] sm:$0xff]
        %v860 = vld [vmem:[%s251 + $0x71] sm:$0xff]
        %v861 = vld [vmem:[%s251 + $0x89] sm:$0xff]
        %v862 = vld [vmem:[%s251 + $0x91] sm:$0xff]
        %v863 = vld [vmem:[%s251 + $0xa9] sm:$0xff]
        %v864 = vld [vmem:[%s251 + $0xb1] sm:$0xff]
        %v865 = vld [vmem:[%s251 + $0xc9] sm:$0xff]
        %v866 = vld [vmem:[%s251 + $0xd1] sm:$0xff]
        %v867 = vld [vmem:[%s251 + $0xe9] sm:$0xff]
        %v868 = vld [vmem:[%s251 + $0xf1] sm:$0xff]
        %v869 = vld [vmem:[%s251 + $0x109] sm:$0xff]
        %v870 = vld [vmem:[%s251 + $0x111] sm:$0xff]
        %v871 = vld [vmem:[%s251 + $0x129] sm:$0xff]
        %v872 = vld [vmem:[%s251 + $0x131] sm:$0xff]
        %v873 = vld [vmem:[%s251 + $0x149] sm:$0xff]
        %v874 = vld [vmem:[%s251 + $0x151] sm:$0xff]
        %v875 = vld [vmem:[%s251 + $0x169] sm:$0xff]
        %v876 = vld [vmem:[%s251 + $0x171] sm:$0xff]
        %v877 = vld [vmem:[%s251 + $0x189] sm:$0xff]
        %v878 = vld [vmem:[%s251 + $0x191] sm:$0xff]
        %v879 = vld [vmem:[%s251 + $0x1a9] sm:$0xff]
        %v880 = vld [vmem:[%s251 + $0x1b1] sm:$0xff]
        %v881 = vld [vmem:[%s251 + $0x1c9] sm:$0xff]
        %v882 = vld [vmem:[%s251 + $0x1d1] sm:$0xff]
        %v883 = vld [vmem:[%s251 + $0x1e9] sm:$0xff]
        %v884 = vld [vmem:[%s251 + $0x1f1] sm:$0xff]
        %v885 = vld [vmem:[#allocation6 + $0x5] sm:$0x1]
        %v886 = vlaneseq
        %v887 = vshrl.u32 %v886, 7
        %v888 = vsub.s32 0, %v887
        %v889 = vrot.slane %v885, %v888
        %v890 = vmul.f32 %v853, %v889
        %v891 = vmul.f32 %v854, %v889
        %v892 = vmul.f32 %v855, %v889
        %v893 = vmul.f32 %v856, %v889
        %v894 = vmul.f32 %v857, %v889
        %v895 = vmul.f32 %v858, %v889
        %v896 = vmul.f32 %v859, %v889
        %v897 = vmul.f32 %v860, %v889
        %v898 = vmul.f32 %v861, %v889
        %v899 = vmul.f32 %v862, %v889
        %v900 = vmul.f32 %v863, %v889
        %v901 = vmul.f32 %v864, %v889
        %v902 = vmul.f32 %v865, %v889
        %v903 = vmul.f32 %v866, %v889
        %v904 = vmul.f32 %v867, %v889
        %v905 = vmul.f32 %v868, %v889
        %v906 = vmul.f32 %v869, %v889
        %v907 = vmul.f32 %v870, %v889
        %v908 = vmul.f32 %v871, %v889
        %v909 = vmul.f32 %v872, %v889
        %v910 = vmul.f32 %v873, %v889
        %v911 = vmul.f32 %v874, %v889
        %v912 = vmul.f32 %v875, %v889
        %v913 = vmul.f32 %v876, %v889
        %v914 = vmul.f32 %v877, %v889
        %v915 = vmul.f32 %v878, %v889
        %v916 = vmul.f32 %v879, %v889
        %v917 = vmul.f32 %v880, %v889
        %v918 = vmul.f32 %v881, %v889
        %v919 = vmul.f32 %v882, %v889
        %v920 = vmul.f32 %v883, %v889
        %v921 = vmul.f32 %v884, %v889
        %v922 = vadd.f32 %v821, %v890
        %v923 = vadd.f32 %v822, %v891
        %v924 = vadd.f32 %v823, %v892
        %v925 = vadd.f32 %v824, %v893
        %v926 = vadd.f32 %v825, %v894
        %v927 = vadd.f32 %v826, %v895
        %v928 = vadd.f32 %v827, %v896
        %v929 = vadd.f32 %v828, %v897
        %v930 = vadd.f32 %v829, %v898
        %v931 = vadd.f32 %v830, %v899
        %v932 = vadd.f32 %v831, %v900
        %v933 = vadd.f32 %v832, %v901
        %v934 = vadd.f32 %v833, %v902
        %v935 = vadd.f32 %v834, %v903
        %v936 = vadd.f32 %v835, %v904
        %v937 = vadd.f32 %v836, %v905
        %v938 = vadd.f32 %v837, %v906
        %v939 = vadd.f32 %v838, %v907
        %v940 = vadd.f32 %v839, %v908
        %v941 = vadd.f32 %v840, %v909
        %v942 = vadd.f32 %v841, %v910
        %v943 = vadd.f32 %v842, %v911
        %v944 = vadd.f32 %v843, %v912
        %v945 = vadd.f32 %v844, %v913
        %v946 = vadd.f32 %v845, %v914
        %v947 = vadd.f32 %v846, %v915
        %v948 = vadd.f32 %v847, %v916
        %v949 = vadd.f32 %v848, %v917
        %v950 = vadd.f32 %v849, %v918
        %v951 = vadd.f32 %v850, %v919
        %v952 = vadd.f32 %v851, %v920
        %v953 = vadd.f32 %v852, %v921
        %s954 = scalar_lea.vmem [#allocation2], 64
        %v955 = vld [vmem:[%s954 + $0x7] sm:$0xff]
        %v956 = vld [vmem:[%s954 + $0xf] sm:$0xff]
        %v957 = vld [vmem:[%s954 + $0x27] sm:$0xff]
        %v958 = vld [vmem:[%s954 + $0x2f] sm:$0xff]
        %v959 = vld [vmem:[%s954 + $0x47] sm:$0xff]
        %v960 = vld [vmem:[%s954 + $0x4f] sm:$0xff]
        %v961 = vld [vmem:[%s954 + $0x67] sm:$0xff]
        %v962 = vld [vmem:[%s954 + $0x6f] sm:$0xff]
        %v963 = vld [vmem:[%s954 + $0x87] sm:$0xff]
        %v964 = vld [vmem:[%s954 + $0x8f] sm:$0xff]
        %v965 = vld [vmem:[%s954 + $0xa7] sm:$0xff]
        %v966 = vld [vmem:[%s954 + $0xaf] sm:$0xff]
        %v967 = vld [vmem:[%s954 + $0xc7] sm:$0xff]
        %v968 = vld [vmem:[%s954 + $0xcf] sm:$0xff]
        %v969 = vld [vmem:[%s954 + $0xe7] sm:$0xff]
        %v970 = vld [vmem:[%s954 + $0xef] sm:$0xff]
        %v971 = vld [vmem:[%s954 + $0x107] sm:$0xff]
        %v972 = vld [vmem:[%s954 + $0x10f] sm:$0xff]
        %v973 = vld [vmem:[%s954 + $0x127] sm:$0xff]
        %v974 = vld [vmem:[%s954 + $0x12f] sm:$0xff]
        %v975 = vld [vmem:[%s954 + $0x147] sm:$0xff]
        %v976 = vld [vmem:[%s954 + $0x14f] sm:$0xff]
        %v977 = vld [vmem:[%s954 + $0x167] sm:$0xff]
        %v978 = vld [vmem:[%s954 + $0x16f] sm:$0xff]
        %v979 = vld [vmem:[%s954 + $0x187] sm:$0xff]
        %v980 = vld [vmem:[%s954 + $0x18f] sm:$0xff]
        %v981 = vld [vmem:[%s954 + $0x1a7] sm:$0xff]
        %v982 = vld [vmem:[%s954 + $0x1af] sm:$0xff]
        %v983 = vld [vmem:[%s954 + $0x1c7] sm:$0xff]
        %v984 = vld [vmem:[%s954 + $0x1cf] sm:$0xff]
        %v985 = vld [vmem:[%s954 + $0x1e7] sm:$0xff]
        %v986 = vld [vmem:[%s954 + $0x1ef] sm:$0xff]
        %v987 = vld [vmem:[#allocation6 + $0x6] sm:$0x1]
        %v988 = vlaneseq
        %v989 = vshrl.u32 %v988, 7
        %v990 = vsub.s32 0, %v989
        %v991 = vrot.slane %v987, %v990
        %v992 = vmul.f32 %v955, %v991
        %v993 = vmul.f32 %v956, %v991
        %v994 = vmul.f32 %v957, %v991
        %v995 = vmul.f32 %v958, %v991
        %v996 = vmul.f32 %v959, %v991
        %v997 = vmul.f32 %v960, %v991
        %v998 = vmul.f32 %v961, %v991
        %v999 = vmul.f32 %v962, %v991
        %v1000 = vmul.f32 %v963, %v991
        %v1001 = vmul.f32 %v964, %v991
        %v1002 = vmul.f32 %v965, %v991
        %v1003 = vmul.f32 %v966, %v991
        %v1004 = vmul.f32 %v967, %v991
        %v1005 = vmul.f32 %v968, %v991
        %v1006 = vmul.f32 %v969, %v991
        %v1007 = vmul.f32 %v970, %v991
        %v1008 = vmul.f32 %v971, %v991
        %v1009 = vmul.f32 %v972, %v991
        %v1010 = vmul.f32 %v973, %v991
        %v1011 = vmul.f32 %v974, %v991
        %v1012 = vmul.f32 %v975, %v991
        %v1013 = vmul.f32 %v976, %v991
        %v1014 = vmul.f32 %v977, %v991
        %v1015 = vmul.f32 %v978, %v991
        %v1016 = vmul.f32 %v979, %v991
        %v1017 = vmul.f32 %v980, %v991
        %v1018 = vmul.f32 %v981, %v991
        %v1019 = vmul.f32 %v982, %v991
        %v1020 = vmul.f32 %v983, %v991
        %v1021 = vmul.f32 %v984, %v991
        %v1022 = vmul.f32 %v985, %v991
        %v1023 = vmul.f32 %v986, %v991
        %v1024 = vadd.f32 %v922, %v992
        %v1025 = vadd.f32 %v923, %v993
        %v1026 = vadd.f32 %v924, %v994
        %v1027 = vadd.f32 %v925, %v995
        %v1028 = vadd.f32 %v926, %v996
        %v1029 = vadd.f32 %v927, %v997
        %v1030 = vadd.f32 %v928, %v998
        %v1031 = vadd.f32 %v929, %v999
        %v1032 = vadd.f32 %v930, %v1000
        %v1033 = vadd.f32 %v931, %v1001
        %v1034 = vadd.f32 %v932, %v1002
        %v1035 = vadd.f32 %v933, %v1003
        %v1036 = vadd.f32 %v934, %v1004
        %v1037 = vadd.f32 %v935, %v1005
        %v1038 = vadd.f32 %v936, %v1006
        %v1039 = vadd.f32 %v937, %v1007
        %v1040 = vadd.f32 %v938, %v1008
        %v1041 = vadd.f32 %v939, %v1009
        %v1042 = vadd.f32 %v940, %v1010
        %v1043 = vadd.f32 %v941, %v1011
        %v1044 = vadd.f32 %v942, %v1012
        %v1045 = vadd.f32 %v943, %v1013
        %v1046 = vadd.f32 %v944, %v1014
        %v1047 = vadd.f32 %v945, %v1015
        %v1048 = vadd.f32 %v946, %v1016
        %v1049 = vadd.f32 %v947, %v1017
        %v1050 = vadd.f32 %v948, %v1018
        %v1051 = vadd.f32 %v949, %v1019
        %v1052 = vadd.f32 %v950, %v1020
        %v1053 = vadd.f32 %v951, %v1021
        %v1054 = vadd.f32 %v952, %v1022
        %v1055 = vadd.f32 %v953, %v1023
        %v1056 = vld [vmem:[%s954 + $0x8] sm:$0xff]
        %v1057 = vld [vmem:[%s954 + $0x10] sm:$0xff]
        %v1058 = vld [vmem:[%s954 + $0x28] sm:$0xff]
        %v1059 = vld [vmem:[%s954 + $0x30] sm:$0xff]
        %v1060 = vld [vmem:[%s954 + $0x48] sm:$0xff]
        %v1061 = vld [vmem:[%s954 + $0x50] sm:$0xff]
        %v1062 = vld [vmem:[%s954 + $0x68] sm:$0xff]
        %v1063 = vld [vmem:[%s954 + $0x70] sm:$0xff]
        %v1064 = vld [vmem:[%s954 + $0x88] sm:$0xff]
        %v1065 = vld [vmem:[%s954 + $0x90] sm:$0xff]
        %v1066 = vld [vmem:[%s954 + $0xa8] sm:$0xff]
        %v1067 = vld [vmem:[%s954 + $0xb0] sm:$0xff]
        %v1068 = vld [vmem:[%s954 + $0xc8] sm:$0xff]
        %v1069 = vld [vmem:[%s954 + $0xd0] sm:$0xff]
        %v1070 = vld [vmem:[%s954 + $0xe8] sm:$0xff]
        %v1071 = vld [vmem:[%s954 + $0xf0] sm:$0xff]
        %v1072 = vld [vmem:[%s954 + $0x108] sm:$0xff]
        %v1073 = vld [vmem:[%s954 + $0x110] sm:$0xff]
        %v1074 = vld [vmem:[%s954 + $0x128] sm:$0xff]
        %v1075 = vld [vmem:[%s954 + $0x130] sm:$0xff]
        %v1076 = vld [vmem:[%s954 + $0x148] sm:$0xff]
        %v1077 = vld [vmem:[%s954 + $0x150] sm:$0xff]
        %v1078 = vld [vmem:[%s954 + $0x168] sm:$0xff]
        %v1079 = vld [vmem:[%s954 + $0x170] sm:$0xff]
        %v1080 = vld [vmem:[%s954 + $0x188] sm:$0xff]
        %v1081 = vld [vmem:[%s954 + $0x190] sm:$0xff]
        %v1082 = vld [vmem:[%s954 + $0x1a8] sm:$0xff]
        %v1083 = vld [vmem:[%s954 + $0x1b0] sm:$0xff]
        %v1084 = vld [vmem:[%s954 + $0x1c8] sm:$0xff]
        %v1085 = vld [vmem:[%s954 + $0x1d0] sm:$0xff]
        %v1086 = vld [vmem:[%s954 + $0x1e8] sm:$0xff]
        %v1087 = vld [vmem:[%s954 + $0x1f0] sm:$0xff]
        %v1088 = vld [vmem:[#allocation6 + $0x7] sm:$0x1]
        %v1089 = vlaneseq
        %v1090 = vshrl.u32 %v1089, 7
        %v1091 = vsub.s32 0, %v1090
        %v1092 = vrot.slane %v1088, %v1091
        %v1093 = vmul.f32 %v1056, %v1092
        %v1094 = vmul.f32 %v1057, %v1092
        %v1095 = vmul.f32 %v1058, %v1092
        %v1096 = vmul.f32 %v1059, %v1092
        %v1097 = vmul.f32 %v1060, %v1092
        %v1098 = vmul.f32 %v1061, %v1092
        %v1099 = vmul.f32 %v1062, %v1092
        %v1100 = vmul.f32 %v1063, %v1092
        %v1101 = vmul.f32 %v1064, %v1092
        %v1102 = vmul.f32 %v1065, %v1092
        %v1103 = vmul.f32 %v1066, %v1092
        %v1104 = vmul.f32 %v1067, %v1092
        %v1105 = vmul.f32 %v1068, %v1092
        %v1106 = vmul.f32 %v1069, %v1092
        %v1107 = vmul.f32 %v1070, %v1092
        %v1108 = vmul.f32 %v1071, %v1092
        %v1109 = vmul.f32 %v1072, %v1092
        %v1110 = vmul.f32 %v1073, %v1092
        %v1111 = vmul.f32 %v1074, %v1092
        %v1112 = vmul.f32 %v1075, %v1092
        %v1113 = vmul.f32 %v1076, %v1092
        %v1114 = vmul.f32 %v1077, %v1092
        %v1115 = vmul.f32 %v1078, %v1092
        %v1116 = vmul.f32 %v1079, %v1092
        %v1117 = vmul.f32 %v1080, %v1092
        %v1118 = vmul.f32 %v1081, %v1092
        %v1119 = vmul.f32 %v1082, %v1092
        %v1120 = vmul.f32 %v1083, %v1092
        %v1121 = vmul.f32 %v1084, %v1092
        %v1122 = vmul.f32 %v1085, %v1092
        %v1123 = vmul.f32 %v1086, %v1092
        %v1124 = vmul.f32 %v1087, %v1092
        %v1125 = vadd.f32 %v1024, %v1093
        %v1126 = vadd.f32 %v1025, %v1094
        %v1127 = vadd.f32 %v1026, %v1095
        %v1128 = vadd.f32 %v1027, %v1096
        %v1129 = vadd.f32 %v1028, %v1097
        %v1130 = vadd.f32 %v1029, %v1098
        %v1131 = vadd.f32 %v1030, %v1099
        %v1132 = vadd.f32 %v1031, %v1100
        %v1133 = vadd.f32 %v1032, %v1101
        %v1134 = vadd.f32 %v1033, %v1102
        %v1135 = vadd.f32 %v1034, %v1103
        %v1136 = vadd.f32 %v1035, %v1104
        %v1137 = vadd.f32 %v1036, %v1105
        %v1138 = vadd.f32 %v1037, %v1106
        %v1139 = vadd.f32 %v1038, %v1107
        %v1140 = vadd.f32 %v1039, %v1108
        %v1141 = vadd.f32 %v1040, %v1109
        %v1142 = vadd.f32 %v1041, %v1110
        %v1143 = vadd.f32 %v1042, %v1111
        %v1144 = vadd.f32 %v1043, %v1112
        %v1145 = vadd.f32 %v1044, %v1113
        %v1146 = vadd.f32 %v1045, %v1114
        %v1147 = vadd.f32 %v1046, %v1115
        %v1148 = vadd.f32 %v1047, %v1116
        %v1149 = vadd.f32 %v1048, %v1117
        %v1150 = vadd.f32 %v1049, %v1118
        %v1151 = vadd.f32 %v1050, %v1119
        %v1152 = vadd.f32 %v1051, %v1120
        %v1153 = vadd.f32 %v1052, %v1121
        %v1154 = vadd.f32 %v1053, %v1122
        %v1155 = vadd.f32 %v1054, %v1123
        %v1156 = vadd.f32 %v1055, %v1124
        %v1157 = vld [vmem:[%s954 + $0x9] sm:$0xff]
        %v1158 = vld [vmem:[%s954 + $0x11] sm:$0xff]
        %v1159 = vld [vmem:[%s954 + $0x29] sm:$0xff]
        %v1160 = vld [vmem:[%s954 + $0x31] sm:$0xff]
        %v1161 = vld [vmem:[%s954 + $0x49] sm:$0xff]
        %v1162 = vld [vmem:[%s954 + $0x51] sm:$0xff]
        %v1163 = vld [vmem:[%s954 + $0x69] sm:$0xff]
        %v1164 = vld [vmem:[%s954 + $0x71] sm:$0xff]
        %v1165 = vld [vmem:[%s954 + $0x89] sm:$0xff]
        %v1166 = vld [vmem:[%s954 + $0x91] sm:$0xff]
        %v1167 = vld [vmem:[%s954 + $0xa9] sm:$0xff]
        %v1168 = vld [vmem:[%s954 + $0xb1] sm:$0xff]
        %v1169 = vld [vmem:[%s954 + $0xc9] sm:$0xff]
        %v1170 = vld [vmem:[%s954 + $0xd1] sm:$0xff]
        %v1171 = vld [vmem:[%s954 + $0xe9] sm:$0xff]
        %v1172 = vld [vmem:[%s954 + $0xf1] sm:$0xff]
        %v1173 = vld [vmem:[%s954 + $0x109] sm:$0xff]
        %v1174 = vld [vmem:[%s954 + $0x111] sm:$0xff]
        %v1175 = vld [vmem:[%s954 + $0x129] sm:$0xff]
        %v1176 = vld [vmem:[%s954 + $0x131] sm:$0xff]
        %v1177 = vld [vmem:[%s954 + $0x149] sm:$0xff]
        %v1178 = vld [vmem:[%s954 + $0x151] sm:$0xff]
        %v1179 = vld [vmem:[%s954 + $0x169] sm:$0xff]
        %v1180 = vld [vmem:[%s954 + $0x171] sm:$0xff]
        %v1181 = vld [vmem:[%s954 + $0x189] sm:$0xff]
        %v1182 = vld [vmem:[%s954 + $0x191] sm:$0xff]
        %v1183 = vld [vmem:[%s954 + $0x1a9] sm:$0xff]
        %v1184 = vld [vmem:[%s954 + $0x1b1] sm:$0xff]
        %v1185 = vld [vmem:[%s954 + $0x1c9] sm:$0xff]
        %v1186 = vld [vmem:[%s954 + $0x1d1] sm:$0xff]
        %v1187 = vld [vmem:[%s954 + $0x1e9] sm:$0xff]
        %v1188 = vld [vmem:[%s954 + $0x1f1] sm:$0xff]
        %v1189 = vld [vmem:[#allocation6 + $0x8] sm:$0x1]
        %v1190 = vlaneseq
        %v1191 = vshrl.u32 %v1190, 7
        %v1192 = vsub.s32 0, %v1191
        %v1193 = vrot.slane %v1189, %v1192
        %v1194 = vmul.f32 %v1157, %v1193
        %v1195 = vmul.f32 %v1158, %v1193
        %v1196 = vmul.f32 %v1159, %v1193
        %v1197 = vmul.f32 %v1160, %v1193
        %v1198 = vmul.f32 %v1161, %v1193
        %v1199 = vmul.f32 %v1162, %v1193
        %v1200 = vmul.f32 %v1163, %v1193
        %v1201 = vmul.f32 %v1164, %v1193
        %v1202 = vmul.f32 %v1165, %v1193
        %v1203 = vmul.f32 %v1166, %v1193
        %v1204 = vmul.f32 %v1167, %v1193
        %v1205 = vmul.f32 %v1168, %v1193
        %v1206 = vmul.f32 %v1169, %v1193
        %v1207 = vmul.f32 %v1170, %v1193
        %v1208 = vmul.f32 %v1171, %v1193
        %v1209 = vmul.f32 %v1172, %v1193
        %v1210 = vmul.f32 %v1173, %v1193
        %v1211 = vmul.f32 %v1174, %v1193
        %v1212 = vmul.f32 %v1175, %v1193
        %v1213 = vmul.f32 %v1176, %v1193
        %v1214 = vmul.f32 %v1177, %v1193
        %v1215 = vmul.f32 %v1178, %v1193
        %v1216 = vmul.f32 %v1179, %v1193
        %v1217 = vmul.f32 %v1180, %v1193
        %v1218 = vmul.f32 %v1181, %v1193
        %v1219 = vmul.f32 %v1182, %v1193
        %v1220 = vmul.f32 %v1183, %v1193
        %v1221 = vmul.f32 %v1184, %v1193
        %v1222 = vmul.f32 %v1185, %v1193
        %v1223 = vmul.f32 %v1186, %v1193
        %v1224 = vmul.f32 %v1187, %v1193
        %v1225 = vmul.f32 %v1188, %v1193
        %v1226 = vadd.f32 %v1125, %v1194
        %v1227 = vadd.f32 %v1126, %v1195
        %v1228 = vadd.f32 %v1127, %v1196
        %v1229 = vadd.f32 %v1128, %v1197
        %v1230 = vadd.f32 %v1129, %v1198
        %v1231 = vadd.f32 %v1130, %v1199
        %v1232 = vadd.f32 %v1131, %v1200
        %v1233 = vadd.f32 %v1132, %v1201
        %v1234 = vadd.f32 %v1133, %v1202
        %v1235 = vadd.f32 %v1134, %v1203
        %v1236 = vadd.f32 %v1135, %v1204
        %v1237 = vadd.f32 %v1136, %v1205
        %v1238 = vadd.f32 %v1137, %v1206
        %v1239 = vadd.f32 %v1138, %v1207
        %v1240 = vadd.f32 %v1139, %v1208
        %v1241 = vadd.f32 %v1140, %v1209
        %v1242 = vadd.f32 %v1141, %v1210
        %v1243 = vadd.f32 %v1142, %v1211
        %v1244 = vadd.f32 %v1143, %v1212
        %v1245 = vadd.f32 %v1144, %v1213
        %v1246 = vadd.f32 %v1145, %v1214
        %v1247 = vadd.f32 %v1146, %v1215
        %v1248 = vadd.f32 %v1147, %v1216
        %v1249 = vadd.f32 %v1148, %v1217
        %v1250 = vadd.f32 %v1149, %v1218
        %v1251 = vadd.f32 %v1150, %v1219
        %v1252 = vadd.f32 %v1151, %v1220
        %v1253 = vadd.f32 %v1152, %v1221
        %v1254 = vadd.f32 %v1153, %v1222
        %v1255 = vadd.f32 %v1154, %v1223
        %v1256 = vadd.f32 %v1155, %v1224
        %v1257 = vadd.f32 %v1156, %v1225
        %v1258 = vld [vmem:[%s241] sm:$0x1]
        %v1260 = vlaneseq
        %v1261 = vshrl.u32 %v1260, 7
        %v1262 = vsub.s32 0, %v1261
        %v1263 = vrot.slane %v1258, %v1262
        %v1265 = vadd.f32 %v1226, %v1263
        %v1266 = vadd.f32 %v1227, %v1263
        %v1267 = vadd.f32 %v1228, %v1263
        %v1268 = vadd.f32 %v1229, %v1263
        %v1269 = vadd.f32 %v1230, %v1263
        %v1270 = vadd.f32 %v1231, %v1263
        %v1271 = vadd.f32 %v1232, %v1263
        %v1272 = vadd.f32 %v1233, %v1263
        %v1273 = vadd.f32 %v1234, %v1263
        %v1274 = vadd.f32 %v1235, %v1263
        %v1275 = vadd.f32 %v1236, %v1263
        %v1276 = vadd.f32 %v1237, %v1263
        %v1277 = vadd.f32 %v1238, %v1263
        %v1278 = vadd.f32 %v1239, %v1263
        %v1279 = vadd.f32 %v1240, %v1263
        %v1280 = vadd.f32 %v1241, %v1263
        %v1281 = vadd.f32 %v1242, %v1263
        %v1282 = vadd.f32 %v1243, %v1263
        %v1283 = vadd.f32 %v1244, %v1263
        %v1284 = vadd.f32 %v1245, %v1263
        %v1285 = vadd.f32 %v1246, %v1263
        %v1286 = vadd.f32 %v1247, %v1263
        %v1287 = vadd.f32 %v1248, %v1263
        %v1288 = vadd.f32 %v1249, %v1263
        %v1289 = vadd.f32 %v1250, %v1263
        %v1290 = vadd.f32 %v1251, %v1263
        %v1291 = vadd.f32 %v1252, %v1263
        %v1292 = vadd.f32 %v1253, %v1263
        %v1293 = vadd.f32 %v1254, %v1263
        %v1294 = vadd.f32 %v1255, %v1263
        %v1295 = vadd.f32 %v1256, %v1263
        %v1296 = vadd.f32 %v1257, %v1263
        %1297 = vst [vmem:[%s238] sm:$0xff] %v1265
        %1298 = vst [vmem:[%s238 + $0x8] sm:$0xff] %v1266
        %1299 = vst [vmem:[%s238 + $0x10] sm:$0xff] %v1267
        %1300 = vst [vmem:[%s238 + $0x18] sm:$0xff] %v1268
        %1301 = vst [vmem:[%s238 + $0x20] sm:$0xff] %v1269
        %1302 = vst [vmem:[%s238 + $0x28] sm:$0xff] %v1270
        %1303 = vst [vmem:[%s238 + $0x30] sm:$0xff] %v1271
        %1304 = vst [vmem:[%s238 + $0x38] sm:$0xff] %v1272
        %1305 = vst [vmem:[%s238 + $0x40] sm:$0xff] %v1273
        %1306 = vst [vmem:[%s238 + $0x48] sm:$0xff] %v1274
        %1307 = vst [vmem:[%s238 + $0x50] sm:$0xff] %v1275
        %1308 = vst [vmem:[%s238 + $0x58] sm:$0xff] %v1276
        %1309 = vst [vmem:[%s238 + $0x60] sm:$0xff] %v1277
        %1310 = vst [vmem:[%s238 + $0x68] sm:$0xff] %v1278
        %1311 = vst [vmem:[%s238 + $0x70] sm:$0xff] %v1279
        %1312 = vst [vmem:[%s238 + $0x78] sm:$0xff] %v1280
        %1313 = vst [vmem:[%s238 + $0x80] sm:$0xff] %v1281
        %1314 = vst [vmem:[%s238 + $0x88] sm:$0xff] %v1282
        %1315 = vst [vmem:[%s238 + $0x90] sm:$0xff] %v1283
        %1316 = vst [vmem:[%s238 + $0x98] sm:$0xff] %v1284
        %1317 = vst [vmem:[%s238 + $0xa0] sm:$0xff] %v1285
        %1318 = vst [vmem:[%s238 + $0xa8] sm:$0xff] %v1286
        %1319 = vst [vmem:[%s238 + $0xb0] sm:$0xff] %v1287
        %1320 = vst [vmem:[%s238 + $0xb8] sm:$0xff] %v1288
        %1321 = vst [vmem:[%s238 + $0xc0] sm:$0xff] %v1289
        %1322 = vst [vmem:[%s238 + $0xc8] sm:$0xff] %v1290
        %1323 = vst [vmem:[%s238 + $0xd0] sm:$0xff] %v1291
        %1324 = vst [vmem:[%s238 + $0xd8] sm:$0xff] %v1292
        %1325 = vst [vmem:[%s238 + $0xe0] sm:$0xff] %v1293
        %1326 = vst [vmem:[%s238 + $0xe8] sm:$0xff] %v1294
        %1327 = vst [vmem:[%s238 + $0xf0] sm:$0xff] %v1295
        %1328 = vst [vmem:[%s238 + $0xf8] sm:$0xff] %v1296
        %s1329 = sand.u32 %s123, 1
        %s1330 = scalar_lea.sflag [#allocation5], %s1329
        %s1331 = sand.u32 %s123, 1
        %s1332 = smul.addr %s1331, 256
        %s1333 = scalar_lea.vmem [#allocation8], %s1332
        // Predicated region
        $region41: #{tpu_custom_call.1} parent=31 // pred_check
          %p1334 = pneg %p133
        $region42: #{tpu_custom_call.1} parent=31 // pred_check_branch
          %1336 = sbr.rel (%p1334) target = $region44
        $region43: #{tpu_custom_call.1} parent=31 // pred_region
          %s1338 = ssub.s32 4096, 4096
          %1339 = vsyncadd %s1330, %s1338
          %s1340 = smul.addr %s25, 32
          %s1341 = sadd.s32 %s26, %s1340
          %s1342 = smul.addr %s1341, 128
          %s1343 = scalar_lea.hbm %s3, %s1342
          %s1344 = sshll.u32 %s1333, 4
          %s1345 = int_to_ptr.vmem [resolvable:$true] %s1344
          %1350 = dma.vmem_to_hbm [thread:$0]  %s1345, 4096, %s1343, %s1330, 128, 128, 8
        $region44: #{tpu_custom_call.1} parent=31 // pred_fallthru
          _
      $region32: #{tpu_custom_call.1} parent=5 // pred_fallthru
        _
      %p1351 = scmp.le.s32.totalorder 2, %s16
      // Predicated region
      $region45: #{tpu_custom_call.1} parent=5 // pred_check
        %p1352 = pneg %p1351
      $region46: #{tpu_custom_call.1} parent=5 // pred_check_branch
        %1354 = sbr.rel (%p1352) target = $region48
      $region47: #{tpu_custom_call.1} parent=5 // pred_region
        %s1355 = ssub.s32 %s16, 2
        // Predicated region
        $region49: #{tpu_custom_call.1} parent=47 // pred_check
          %p1356 = pneg %p139
        $region50: #{tpu_custom_call.1} parent=47 // pred_check_branch
          %1358 = sbr.rel (%p1356) target = $region52
        $region51: #{tpu_custom_call.1} parent=47 // pred_region
          %s1359 = sand.u32 %s124, 1
          %s1360 = scalar_lea.sflag [#allocation5], %s1359
          %s1361 = sand.u32 %s124, 1
          %s1362 = smul.addr %s1361, 256
          %s1363 = scalar_lea.vmem [#allocation8], %s1362
          %1364 = dma.done %s1360, 4096
        $region52: #{tpu_custom_call.1} parent=47 // pred_fallthru
          _
      $region48: #{tpu_custom_call.1} parent=5 // pred_fallthru
        _
    $region6: #{tpu_custom_call.1} parent=1 // loop_footer
      %s20 = sadd.s32 1, %s16
    $region7: #{tpu_custom_call.1} parent=1 // loop_footer_branch
      %15 = sbr.rel target = $region3
    $region8: #{tpu_custom_call.1} parent=1 // loop_exit
      _
    %1365 = vsyncpa [#allocation4], 1
    %s1366 = scalar_lea.sflag [#allocation4], 1
    %1367 = vsyncpa %s1366, 1
    %1368 = vsyncpa [#allocation7], 1
    %1369 = vsyncpa [#allocation5], 1
    %s1370 = scalar_lea.sflag [#allocation5], 1
    %1371 = vsyncpa %s1370, 1

</llo_original>
